<compile_context>
chip_gen: v7x
topology: tpu7x:2x2x1
jax: 0.10.0
libtpu: 0.0.40
codegen_flags: <defaults>
</compile_context>

<pallas_src>
import functools
import math

import jax
import jax.numpy as jnp
from jax.experimental import pallas as pl
from jax.experimental.pallas import tpu as pltpu


# ----------------------------------------------------------------------------
# Kernel
# ----------------------------------------------------------------------------
def _conv_bn_relu_kernel(x_ref, w_ref, b_ref, o_ref, *,
                         nb, ho, wo, kh, kw, sh, sw, c_in, c_out):
    f32 = jnp.float32
    m = nb * ho * wo

    def tap(i, j):
        # Ref-level (strided) slice: loads only the rows/cols this tap needs.
        hsl = pl.ds(i, ho) if sh == 1 else pl.ds(i, ho, stride=sh)
        wsl = pl.ds(j, wo) if sw == 1 else pl.ds(j, wo, stride=sw)
        return x_ref[:, hsl, wsl, :].reshape(m, c_in)      # (M, c_in) bf16

    acc = None                                             # f32 accumulator
    for i in range(kh):                                    # static row loop
        if kw == 1:
            xrow = tap(i, 0)                               # (M, c_in)
        else:
            # Fuse the kw taps along the contraction dim: (M, kw*c_in).
            xrow = jnp.concatenate([tap(i, j) for j in range(kw)], axis=1)
        part = jnp.dot(xrow, w_ref[i],                     # (kw*c_in, c_out)
                       preferred_element_type=f32)
        acc = part if acc is None else acc + part

    y = jnp.maximum(acc + b_ref[...], 0.0)                 # bias + ReLU in f32
    o_ref[...] = y.reshape(nb, ho, wo, c_out).astype(o_ref.dtype)


# ----------------------------------------------------------------------------
# Chip-aware sizing helpers
# ----------------------------------------------------------------------------
def _vmem_limit_bytes():
    """Scoped VMEM limit: ~75% of physical, capped (48 MiB on 64 MiB v7x,
    ~96-100 MiB on 128 MiB v5e/v6e)."""
    try:
        cap = int(pltpu.get_tpu_info().vmem_capacity_bytes)
    except Exception:
        cap = 64 * 1024 * 1024          # v7x-safe fallback
    return int(min((cap * 3) // 4, 100 * 1024 * 1024))


def _pick_block_n(n, hp, wp, ho, wo, c_in, c_out_p, kh, kw, out_itemsize,
                  vmem_limit):
    """Largest batch block whose working set fits a chip-aware VMEM budget.

    Charges double-buffered input/output blocks, the f32 accumulator and the
    fused-row bf16 operand.  Prefers an even (>= 2) number of grid steps so
    the "parallel" batch axis shards across v7x's two TensorCores, unless
    that would shrink the per-step matmul M below ~256 rows (v5e guidance)."""
    fixed = 2 * (kh * kw * c_in * c_out_p * 2) + c_out_p * 4   # weights x2 + bias
    budget = max(int(vmem_limit * 0.7) - fixed, 1 << 20)
    per_img = (2 * hp * wp * c_in * 2                    # bf16 input, 2 buffers
               + 2 * ho * wo * c_out_p * out_itemsize    # output block, 2 buffers
               + ho * wo * c_out_p * 4                   # f32 accumulator
               + 2 * ho * wo * kw * c_in * 2)            # tap slices + fused row
    nb = max(1, min(n, budget // max(per_img, 1)))
    while n % nb:
        nb -= 1
    if (n // nb) % 2 and n > 1:                          # prefer even step count
        cand = nb - 1
        while cand >= 1 and (n % cand or (n // cand) % 2):
            cand -= 1
        if cand >= 1 and cand * ho * wo >= 256:
            nb = cand
    return nb


# ----------------------------------------------------------------------------
# Wrappers
# ----------------------------------------------------------------------------
def fold_bn(w_oihw, gamma, beta, mean, var, eps=1e-3):
    """Fold inference BatchNorm2d into the conv.  Returns HWIO bf16 weight and
    an f32 bias (bias/ReLU math stays f32 to preserve accuracy)."""
    s = gamma / jnp.sqrt(var + eps)                            # (c_out,)
    w_hwio = jnp.transpose(w_oihw, (2, 3, 1, 0)) * s           # (kh,kw,c_in,c_out)
    bias = beta - mean * s
    return w_hwio.astype(jnp.bfloat16), bias.astype(jnp.float32)


def basic_conv2d_nhwc(x_nhwc, w_hwio, bias, *, stride=1, padding=0,
                      block_n=None, out_dtype=jnp.bfloat16,
                      pad_out_lanes=True):
    n, h, w, c_in = x_nhwc.shape
    kh, kw, c_in_w, c_out = w_hwio.shape
    assert c_in_w == c_in
    sh = sw = int(stride)
    ph = pw = int(padding)
    ho = (h + 2 * ph - kh) // sh + 1
    wo = (w + 2 * pw - kw) // sw + 1
    hp, wp = h + 2 * ph, w + 2 * pw

    # Lane-dense output channels: pad c_out up to a multiple of 128 (zero
    # weight columns -> zero outputs, sliced off below).  Skipped for tiny
    # c_out where the extra writeback would outweigh the store-path win.
    c_out_p = c_out
    if pad_out_lanes and c_out >= 32 and c_out % 128:
        c_out_p = ((c_out + 127) // 128) * 128

    xb = x_nhwc.astype(jnp.bfloat16)                     # bf16 MXU operands
    if ph or pw:
        xb = jnp.pad(xb, ((0, 0), (ph, ph), (pw, pw), (0, 0)))

    wt = w_hwio.astype(jnp.bfloat16)
    bt = bias.astype(jnp.float32)
    if c_out_p != c_out:
        wt = jnp.pad(wt, ((0, 0), (0, 0), (0, 0), (0, c_out_p - c_out)))
        bt = jnp.pad(bt, ((0, c_out_p - c_out),))
    # Fused-kw weight layout: row index = j*c_in + c, matching the in-kernel
    # concatenation of the kw taps along the channel axis.
    wt = wt.reshape(kh, kw * c_in, c_out_p)
    bt = bt.reshape(1, c_out_p)

    out_itemsize = jnp.dtype(out_dtype).itemsize
    vmem_limit = _vmem_limit_bytes()
    nb = block_n or _pick_block_n(n, hp, wp, ho, wo, c_in, c_out_p, kh, kw,
                                  out_itemsize, vmem_limit)
    assert n % nb == 0

    kernel = functools.partial(_conv_bn_relu_kernel, nb=nb, ho=ho, wo=wo,
                               kh=kh, kw=kw, sh=sh, sw=sw,
                               c_in=c_in, c_out=c_out_p)

    flops = 2 * n * ho * wo * kh * kw * c_in * c_out_p
    bytes_accessed = int(xb.size * 2 + wt.size * 2 + bt.size * 4
                         + n * ho * wo * c_out_p * out_itemsize)

    grid_spec = pltpu.PrefetchScalarGridSpec(
        num_scalar_prefetch=0,
        grid=(n // nb,),
        in_specs=[
            pl.BlockSpec((nb, hp, wp, c_in), lambda g: (g, 0, 0, 0)),
            # Grid-invariant weights / bias (small at these channel counts).
            pl.BlockSpec((kh, kw * c_in, c_out_p), lambda g: (0, 0, 0)),
            pl.BlockSpec((1, c_out_p), lambda g: (0, 0)),
        ],
        out_specs=pl.BlockSpec((nb, ho, wo, c_out_p), lambda g: (g, 0, 0, 0)),
    )

    y = pl.pallas_call(
        kernel,
        out_shape=jax.ShapeDtypeStruct((n, ho, wo, c_out_p), out_dtype),
        grid_spec=grid_spec,
        compiler_params=pltpu.CompilerParams(
            dimension_semantics=("parallel",),
            vmem_limit_bytes=vmem_limit),
        cost_estimate=pl.CostEstimate(flops=flops, transcendentals=0,
                                      bytes_accessed=bytes_accessed),
    )(xb, wt, bt)

    return y[..., :c_out] if c_out_p != c_out else y


def basic_conv2d_nchw(x_nchw, w_hwio, bias, *, stride=1, padding=0):
    """PyTorch-compatible NCHW/f32 boundary.  For stacked layers, stay NHWC
    and call basic_conv2d_nhwc directly (bf16 output, no HBM transposes)."""
    x = jnp.transpose(x_nchw, (0, 2, 3, 1))
    y = basic_conv2d_nhwc(x, w_hwio, bias, stride=stride, padding=padding,
                          out_dtype=jnp.float32)
    return jnp.transpose(y, (0, 3, 1, 2))


# ----------------------------------------------------------------------------
# Reference (plain XLA) for correctness checking
# ----------------------------------------------------------------------------
def reference_nchw(x_nchw, w_hwio_bf16, bias, *, stride=1, padding=0):
    x = jnp.transpose(x_nchw, (0, 2, 3, 1)).astype(jnp.bfloat16)
    y = jax.lax.conv_general_dilated(
        x, w_hwio_bf16,
        window_strides=(stride, stride),
        padding=[(padding, padding), (padding, padding)],
        dimension_numbers=('NHWC', 'HWIO', 'NHWC'),
        preferred_element_type=jnp.float32)
    y = jnp.maximum(y + bias.reshape(1, 1, 1, -1).astype(jnp.float32), 0.0)
    return jnp.transpose(y, (0, 3, 1, 2))


# ----------------------------------------------------------------------------
# Demo / self-test (small deterministic shapes)
# ----------------------------------------------------------------------------
if __name__ == "__main__":
    key = jax.random.PRNGKey(0)

    def make_case(k, n, c_in, c_out, h, w, ksz):
        k1, k2, k3, k4, k5, k6 = jax.random.split(k, 6)
        x = jax.random.normal(k1, (n, c_in, h, w), jnp.float32)
        wt = jax.random.normal(k2, (c_out, c_in, ksz, ksz), jnp.float32)
        wt = wt / math.sqrt(ksz * ksz * c_in)
        gamma = 1.0 + 0.1 * jax.random.normal(k3, (c_out,), jnp.float32)
        beta = 0.1 * jax.random.normal(k4, (c_out,), jnp.float32)
        mean = 0.1 * jax.random.normal(k5, (c_out,), jnp.float32)
        var = 1.0 + 0.5 * jax.random.uniform(k6, (c_out,), jnp.float32)
        return x, wt, (gamma, beta, mean, var)

    k_a, k_b, k_c = jax.random.split(key, 3)

    def check(k, n, c_in, c_out, h, w, ksz, stride, padding, tag):
        x, wt, bn = make_case(k, n, c_in, c_out, h, w, ksz)
        w_hwio, bias = fold_bn(wt, *bn)
        out = jax.block_until_ready(
            basic_conv2d_nchw(x, w_hwio, bias, stride=stride, padding=padding))
        ref = reference_nchw(x, w_hwio, bias, stride=stride, padding=padding)
        assert out.shape == ref.shape, (tag, out.shape, ref.shape)
        err = float(jnp.max(jnp.abs(out - ref)))
        assert err < 2e-2, f"{tag}: max abs err {err}"
        return out.shape

    # Case A: 3x3 conv, stride 1, padding 1 (same-size output, tiny channels).
    sa = check(k_a, 2, 4, 8, 16, 16, 3, 1, 1, "3x3 s1 p1")
    assert sa == (2, 8, 16, 16)

    # Case B: 3x3 conv, stride 2, padding 1 (strided ref slices + c_out->128 pad).
    sb = check(k_b, 2, 8, 32, 16, 16, 3, 2, 1, "3x3 s2 p1")
    assert sb == (2, 32, 8, 8)

    # Case C: 1x1 pointwise conv, stride 1, no padding.
    sc = check(k_c, 2, 8, 16, 16, 16, 1, 1, 0, "1x1 s1 p0")
    assert sc == (2, 16, 16, 16)

    print("KERNEL_OK")
</pallas_src>

<mosaic_0001>
module attributes {stable_mosaic.version = 11 : i64} {
  func.func @_conv_bn_relu_kernel(%arg0: i32, %arg1: memref<1x18x18x4xbf16, #tpu.memory_space<vmem>>, %arg2: memref<3x12x8xbf16, #tpu.memory_space<vmem>>, %arg3: memref<1x8xf32, #tpu.memory_space<vmem>>, %arg4: memref<1x16x16x8xf32, #tpu.memory_space<vmem>>) attributes {dimension_semantics = [#tpu.dimension_semantics<parallel>], iteration_bounds = array<i64: 2>, scalar_prefetch = 0 : i64, scratch_operands = 0 : i64, tpu.core_type = #tpu.core_type<tc>, window_params = [{transform_indices = @transform_0, window_bounds = array<i64: 1, 18, 18, 4>}, {pipeline_mode = #tpu.pipeline_mode<synchronous>, transform_indices = @transform_1, window_bounds = array<i64: 3, 12, 8>}, {pipeline_mode = #tpu.pipeline_mode<synchronous>, transform_indices = @transform_2, window_bounds = array<i64: 1, 8>}, {transform_indices = @transform_3, window_bounds = array<i64: 1, 16, 16, 8>}]} {
    %c0 = arith.constant 0 : index
    %c0_0 = arith.constant 0 : index
    %c0_1 = arith.constant 0 : index
    %c0_2 = arith.constant 0 : index
    %0 = vector.load %arg1[%c0, %c0_0, %c0_1, %c0_2] : memref<1x18x18x4xbf16, #tpu.memory_space<vmem>>, vector<1x16x16x4xbf16>
    %1 = vector.shape_cast %0 : vector<1x16x16x4xbf16> to vector<256x4xbf16>
    %c0_3 = arith.constant 0 : index
    %c0_4 = arith.constant 0 : index
    %c1 = arith.constant 1 : index
    %c0_5 = arith.constant 0 : index
    %2 = vector.load %arg1[%c0_3, %c0_4, %c1, %c0_5] : memref<1x18x18x4xbf16, #tpu.memory_space<vmem>>, vector<1x16x16x4xbf16>
    %3 = vector.shape_cast %2 : vector<1x16x16x4xbf16> to vector<256x4xbf16>
    %c0_6 = arith.constant 0 : index
    %c0_7 = arith.constant 0 : index
    %c2 = arith.constant 2 : index
    %c0_8 = arith.constant 0 : index
    %4 = vector.load %arg1[%c0_6, %c0_7, %c2, %c0_8] : memref<1x18x18x4xbf16, #tpu.memory_space<vmem>>, vector<1x16x16x4xbf16>
    %5 = vector.shape_cast %4 : vector<1x16x16x4xbf16> to vector<256x4xbf16>
    %6 = tpu.concatenate %1, %3, %5 in 1 : vector<256x4xbf16>, vector<256x4xbf16>, vector<256x4xbf16> -> vector<256x12xbf16>
    %c0_9 = arith.constant 0 : index
    %c0_10 = arith.constant 0 : index
    %c0_11 = arith.constant 0 : index
    %7 = vector.load %arg2[%c0_9, %c0_10, %c0_11] : memref<3x12x8xbf16, #tpu.memory_space<vmem>>, vector<1x12x8xbf16>
    %8 = vector.shape_cast %7 : vector<1x12x8xbf16> to vector<12x8xbf16>
    %cst = arith.constant dense<0.000000e+00> : vector<256x8xf32>
    %9 = tpu.matmul %6, %8, %cst {dimension_numbers = #tpu.dot_dimension_numbers<[1], [0], [0], [1], [0, 0, 1, 1], [], []>} : vector<256x12xbf16>, vector<12x8xbf16>, vector<256x8xf32> -> vector<256x8xf32>
    %c0_12 = arith.constant 0 : index
    %c1_13 = arith.constant 1 : index
    %c0_14 = arith.constant 0 : index
    %c0_15 = arith.constant 0 : index
    %10 = vector.load %arg1[%c0_12, %c1_13, %c0_14, %c0_15] : memref<1x18x18x4xbf16, #tpu.memory_space<vmem>>, vector<1x16x16x4xbf16>
    %11 = vector.shape_cast %10 : vector<1x16x16x4xbf16> to vector<256x4xbf16>
    %c0_16 = arith.constant 0 : index
    %c1_17 = arith.constant 1 : index
    %c1_18 = arith.constant 1 : index
    %c0_19 = arith.constant 0 : index
    %12 = vector.load %arg1[%c0_16, %c1_17, %c1_18, %c0_19] : memref<1x18x18x4xbf16, #tpu.memory_space<vmem>>, vector<1x16x16x4xbf16>
    %13 = vector.shape_cast %12 : vector<1x16x16x4xbf16> to vector<256x4xbf16>
    %c0_20 = arith.constant 0 : index
    %c1_21 = arith.constant 1 : index
    %c2_22 = arith.constant 2 : index
    %c0_23 = arith.constant 0 : index
    %14 = vector.load %arg1[%c0_20, %c1_21, %c2_22, %c0_23] : memref<1x18x18x4xbf16, #tpu.memory_space<vmem>>, vector<1x16x16x4xbf16>
    %15 = vector.shape_cast %14 : vector<1x16x16x4xbf16> to vector<256x4xbf16>
    %16 = tpu.concatenate %11, %13, %15 in 1 : vector<256x4xbf16>, vector<256x4xbf16>, vector<256x4xbf16> -> vector<256x12xbf16>
    %c1_24 = arith.constant 1 : index
    %c0_25 = arith.constant 0 : index
    %c0_26 = arith.constant 0 : index
    %17 = vector.load %arg2[%c1_24, %c0_25, %c0_26] : memref<3x12x8xbf16, #tpu.memory_space<vmem>>, vector<1x12x8xbf16>
    %18 = vector.shape_cast %17 : vector<1x12x8xbf16> to vector<12x8xbf16>
    %cst_27 = arith.constant dense<0.000000e+00> : vector<256x8xf32>
    %19 = tpu.matmul %16, %18, %cst_27 {dimension_numbers = #tpu.dot_dimension_numbers<[1], [0], [0], [1], [0, 0, 1, 1], [], []>} : vector<256x12xbf16>, vector<12x8xbf16>, vector<256x8xf32> -> vector<256x8xf32>
    %20 = arith.addf %9, %19 : vector<256x8xf32>
    %c0_28 = arith.constant 0 : index
    %c2_29 = arith.constant 2 : index
    %c0_30 = arith.constant 0 : index
    %c0_31 = arith.constant 0 : index
    %21 = vector.load %arg1[%c0_28, %c2_29, %c0_30, %c0_31] : memref<1x18x18x4xbf16, #tpu.memory_space<vmem>>, vector<1x16x16x4xbf16>
    %22 = vector.shape_cast %21 : vector<1x16x16x4xbf16> to vector<256x4xbf16>
    %c0_32 = arith.constant 0 : index
    %c2_33 = arith.constant 2 : index
    %c1_34 = arith.constant 1 : index
    %c0_35 = arith.constant 0 : index
    %23 = vector.load %arg1[%c0_32, %c2_33, %c1_34, %c0_35] : memref<1x18x18x4xbf16, #tpu.memory_space<vmem>>, vector<1x16x16x4xbf16>
    %24 = vector.shape_cast %23 : vector<1x16x16x4xbf16> to vector<256x4xbf16>
    %c0_36 = arith.constant 0 : index
    %c2_37 = arith.constant 2 : index
    %c2_38 = arith.constant 2 : index
    %c0_39 = arith.constant 0 : index
    %25 = vector.load %arg1[%c0_36, %c2_37, %c2_38, %c0_39] : memref<1x18x18x4xbf16, #tpu.memory_space<vmem>>, vector<1x16x16x4xbf16>
    %26 = vector.shape_cast %25 : vector<1x16x16x4xbf16> to vector<256x4xbf16>
    %27 = tpu.concatenate %22, %24, %26 in 1 : vector<256x4xbf16>, vector<256x4xbf16>, vector<256x4xbf16> -> vector<256x12xbf16>
    %c2_40 = arith.constant 2 : index
    %c0_41 = arith.constant 0 : index
    %c0_42 = arith.constant 0 : index
    %28 = vector.load %arg2[%c2_40, %c0_41, %c0_42] : memref<3x12x8xbf16, #tpu.memory_space<vmem>>, vector<1x12x8xbf16>
    %29 = vector.shape_cast %28 : vector<1x12x8xbf16> to vector<12x8xbf16>
    %cst_43 = arith.constant dense<0.000000e+00> : vector<256x8xf32>
    %30 = tpu.matmul %27, %29, %cst_43 {dimension_numbers = #tpu.dot_dimension_numbers<[1], [0], [0], [1], [0, 0, 1, 1], [], []>} : vector<256x12xbf16>, vector<12x8xbf16>, vector<256x8xf32> -> vector<256x8xf32>
    %31 = arith.addf %20, %30 : vector<256x8xf32>
    %c0_44 = arith.constant 0 : index
    %c0_45 = arith.constant 0 : index
    %32 = vector.load %arg3[%c0_44, %c0_45] : memref<1x8xf32, #tpu.memory_space<vmem>>, vector<1x8xf32>
    %33 = vector.broadcast %32 : vector<1x8xf32> to vector<256x8xf32>
    %34 = arith.addf %31, %33 : vector<256x8xf32>
    %cst_46 = arith.constant 0.000000e+00 : f32
    %35 = vector.broadcast %cst_46 : f32 to vector<256x8xf32>
    %36 = arith.maximumf %34, %35 : vector<256x8xf32>
    %37 = vector.shape_cast %36 : vector<256x8xf32> to vector<1x16x16x8xf32>
    %c0_47 = arith.constant 0 : index
    %c0_48 = arith.constant 0 : index
    %c0_49 = arith.constant 0 : index
    %c0_50 = arith.constant 0 : index
    %38 = vector.load %arg4[%c0_47, %c0_48, %c0_49, %c0_50] : memref<1x16x16x8xf32, #tpu.memory_space<vmem>>, vector<1x16x16x8xf32>
    tpu.vector_store %arg4[%c0_47, %c0_48, %c0_49, %c0_50], %37 {strides = array<i32>} : memref<1x16x16x8xf32, #tpu.memory_space<vmem>>, vector<1x16x16x8xf32>,
    return
  }
  func.func @transform_0(%arg0: i32) -> (i32, i32, i32, i32) {
    %c0_i32 = arith.constant 0 : i32
    %c0_i32_0 = arith.constant 0 : i32
    %c0_i32_1 = arith.constant 0 : i32
    %c0_i32_2 = arith.constant 0 : i32
    return %arg0, %c0_i32, %c0_i32_0, %c0_i32_1 : i32, i32, i32, i32
  }
  func.func @transform_1(%arg0: i32) -> (i32, i32, i32) {
    %c0_i32 = arith.constant 0 : i32
    %c0_i32_0 = arith.constant 0 : i32
    %c0_i32_1 = arith.constant 0 : i32
    %c0_i32_2 = arith.constant 0 : i32
    return %c0_i32, %c0_i32_0, %c0_i32_1 : i32, i32, i32
  }
  func.func @transform_2(%arg0: i32) -> (i32, i32) {
    %c0_i32 = arith.constant 0 : i32
    %c0_i32_0 = arith.constant 0 : i32
    %c0_i32_1 = arith.constant 0 : i32
    return %c0_i32, %c0_i32_0 : i32, i32
  }
  func.func @transform_3(%arg0: i32) -> (i32, i32, i32, i32) {
    %c0_i32 = arith.constant 0 : i32
    %c0_i32_0 = arith.constant 0 : i32
    %c0_i32_1 = arith.constant 0 : i32
    %c0_i32_2 = arith.constant 0 : i32
    return %arg0, %c0_i32, %c0_i32_0, %c0_i32_1 : i32, i32, i32, i32
  }
}

</mosaic_0001>

<llo_original>
// kernel: tpu_custom_call.1
$region0: #{tpu_custom_call.1}
  #allocation0 [shape = 'u32[]', space=smem, size = 0x4, offset = 0x4, fixed_abs, tag = 'smem constant byte address 0x4 - core index']
  #allocation1 [shape = 'u32[144,128]{1,0:T(1,128)}', space=vmem, size = 0x12000, scoped, tag = 'internal scratch']
  %s0 = inlined_call_operand.vmem [shape: bf16[2,18,18,4], index: 0, kind: input, shape index: {}]
  %s1 = inlined_call_operand.vmem [shape: bf16[3,12,8], index: 1, kind: input, shape index: {}]
  %s2 = inlined_call_operand.vmem [shape: f32[1,8], index: 2, kind: input, shape index: {}]
  %s3 = inlined_call_operand.vmem [shape: f32[2,16,16,8], index: 3, kind: output, shape index: {}]
  %s4 = sld [smem:[#allocation0]]
  $region45: #{tpu_custom_call.1} parent=0
    _
  %s6 = ssub.s32 1, %s4
  %s7 = scalar_select 0, %s6, %s4
  loop: start=0, step=1, limit=4
  $region2: #{tpu_custom_call.1} parent=0 // loop_pre_header
    _
  $region3: #{tpu_custom_call.1} parent=0 // loop_header
    %s9 = sphi 0, %s13
    %p10 = scmp.ge.s32.totalorder %s9, 4
    %s19 = sphi 0, %s21
    %s22 = sphi 0, %s19
    %s23 = sphi 0, %s22
    %s39 = sphi 0, %s23
    %s43 = sphi 0, %s43
    %s45 = sphi 0, %s43
    %s46 = sphi 0, %s45
    %s60 = sphi 0, %s46
    %s64 = sphi 0, %s64
    %s66 = sphi 0, %s64
    %s67 = sphi 0, %s66
    %s81 = sphi 0, %s67
    %s87 = sphi 0, %s89
    %s90 = sphi 0, %s87
    %s91 = sphi 0, %s90
    %s107 = sphi 0, %s91
  $region4: #{tpu_custom_call.1} parent=0 // loop_header_branch
    %12 = sbr.rel (%p10) target = $region8
  $region5: #{tpu_custom_call.1} parent=0 // loop_body
    %s14 = ssub.s32 %s9, 1
    %s15 = ssub.s32 %s9, 2
    %s16 = sadd.s32 %s9, 1
    %s17 = ssub.s32 %s9, %s16
    %p18 = scmp.eq.s32.totalorder %s17, 0
    %s20 = sadd.s32 %s19, 1
    %s21 = scalar_select %p18, %s19, %s20
    %p24 = pneg %p18
    %p25 = scmp.eq.s32.totalorder %s9, 1
    %p26 = por %p24, %p25
    %p27 = scmp.ne.s32.totalorder %s19, %s22
    %p28 = scmp.eq.s32.totalorder %s9, 0
    %p29 = por %p27, %p28
    %p30 = scmp.ne.s32.totalorder %s19, %s22
    %p31 = scmp.eq.s32.totalorder %s14, 1
    %p32 = por %p30, %p31
    %p33 = scmp.ne.s32.totalorder %s22, %s23
    %p34 = scmp.eq.s32.totalorder %s14, 0
    %p35 = por %p33, %p34
    %p36 = scmp.ne.s32.totalorder %s22, %s23
    %p37 = scmp.eq.s32.totalorder %s15, 1
    %p38 = por %p36, %p37
    %p40 = scmp.ne.s32.totalorder %s23, %s39
    %p41 = scmp.eq.s32.totalorder %s15, 0
    %p42 = por %p40, %p41
    %s44 = sadd.s32 %s43, 1
    %p47 = scmp.eq.s32.totalorder %s9, 1
    %p48 = scmp.ne.s32.totalorder %s43, %s45
    %p49 = scmp.eq.s32.totalorder %s9, 0
    %p50 = por %p48, %p49
    %p51 = scmp.ne.s32.totalorder %s43, %s45
    %p52 = scmp.eq.s32.totalorder %s14, 1
    %p53 = por %p51, %p52
    %p54 = scmp.ne.s32.totalorder %s45, %s46
    %p55 = scmp.eq.s32.totalorder %s14, 0
    %p56 = por %p54, %p55
    %p57 = scmp.ne.s32.totalorder %s45, %s46
    %p58 = scmp.eq.s32.totalorder %s15, 1
    %p59 = por %p57, %p58
    %p61 = scmp.ne.s32.totalorder %s46, %s60
    %p62 = scmp.eq.s32.totalorder %s15, 0
    %p63 = por %p61, %p62
    %s65 = sadd.s32 %s64, 1
    %p68 = scmp.eq.s32.totalorder %s9, 1
    %p69 = scmp.ne.s32.totalorder %s64, %s66
    %p70 = scmp.eq.s32.totalorder %s9, 0
    %p71 = por %p69, %p70
    %p72 = scmp.ne.s32.totalorder %s64, %s66
    %p73 = scmp.eq.s32.totalorder %s14, 1
    %p74 = por %p72, %p73
    %p75 = scmp.ne.s32.totalorder %s66, %s67
    %p76 = scmp.eq.s32.totalorder %s14, 0
    %p77 = por %p75, %p76
    %p78 = scmp.ne.s32.totalorder %s66, %s67
    %p79 = scmp.eq.s32.totalorder %s15, 1
    %p80 = por %p78, %p79
    %p82 = scmp.ne.s32.totalorder %s67, %s81
    %p83 = scmp.eq.s32.totalorder %s15, 0
    %p84 = por %p82, %p83
    %s85 = ssub.s32 %s9, %s16
    %p86 = scmp.eq.s32.totalorder %s85, 0
    %s88 = sadd.s32 %s87, 1
    %s89 = scalar_select %p86, %s87, %s88
    %p92 = pneg %p86
    %p93 = scmp.eq.s32.totalorder %s9, 1
    %p94 = por %p92, %p93
    %p95 = scmp.ne.s32.totalorder %s87, %s90
    %p96 = scmp.eq.s32.totalorder %s9, 0
    %p97 = por %p95, %p96
    %p98 = scmp.ne.s32.totalorder %s87, %s90
    %p99 = scmp.eq.s32.totalorder %s14, 1
    %p100 = por %p98, %p99
    %p101 = scmp.ne.s32.totalorder %s90, %s91
    %p102 = scmp.eq.s32.totalorder %s14, 0
    %p103 = por %p101, %p102
    %p104 = scmp.ne.s32.totalorder %s90, %s91
    %p105 = scmp.eq.s32.totalorder %s15, 1
    %p106 = por %p104, %p105
    %p108 = scmp.ne.s32.totalorder %s91, %s107
    %p109 = scmp.eq.s32.totalorder %s15, 0
    %p110 = por %p108, %p109
    %p111 = scmp.le.s32.totalorder 1, %s9
    %p112 = scmp.lt.s32.totalorder %s9, 3
    %p113 = pnand %p111, %p112
    %p114 = pneg %p113
    // Predicated region
    $region9: #{tpu_custom_call.1} parent=5 // pred_check
      _
    $region10: #{tpu_custom_call.1} parent=5 // pred_check_branch
      %116 = sbr.rel (%p113) target = $region12
    $region11: #{tpu_custom_call.1} parent=5 // pred_region
      %s117 = ssub.s32 %s9, 1
      // Predicated region
      $region13: #{tpu_custom_call.1} parent=11 // pred_check
        %p118 = pneg %p56
      $region14: #{tpu_custom_call.1} parent=11 // pred_check_branch
        %120 = sbr.rel (%p118) target = $region16
      $region15: #{tpu_custom_call.1} parent=11 // pred_region
        _
      $region16: #{tpu_custom_call.1} parent=11 // pred_fallthru
        _
      // Predicated region
      $region17: #{tpu_custom_call.1} parent=11 // pred_check
        %p121 = pneg %p77
      $region18: #{tpu_custom_call.1} parent=11 // pred_check_branch
        %123 = sbr.rel (%p121) target = $region20
      $region19: #{tpu_custom_call.1} parent=11 // pred_region
        _
      $region20: #{tpu_custom_call.1} parent=11 // pred_fallthru
        _
    $region12: #{tpu_custom_call.1} parent=5 // pred_fallthru
      _
    %p124 = scmp.lt.s32.totalorder %s9, 2
    // Predicated region
    $region21: #{tpu_custom_call.1} parent=5 // pred_check
      %p125 = pneg %p124
    $region22: #{tpu_custom_call.1} parent=5 // pred_check_branch
      %127 = sbr.rel (%p125) target = $region24
    $region23: #{tpu_custom_call.1} parent=5 // pred_region
      // Predicated region
      $region25: #{tpu_custom_call.1} parent=23 // pred_check
        %p128 = pneg %p29
      $region26: #{tpu_custom_call.1} parent=23 // pred_check_branch
        %130 = sbr.rel (%p128) target = $region28
      $region27: #{tpu_custom_call.1} parent=23 // pred_region
        %p131 = scmp.lt.s32.totalorder %s9, 1
        %s132 = scalar_select %p131, %s9, 1
        %s133 = smul.addr %s132, 54
        %s134 = smul.addr %s133, 4
        %s135 = scalar_lea.vmem %s0, %s134
      $region28: #{tpu_custom_call.1} parent=23 // pred_fallthru
        _
    $region24: #{tpu_custom_call.1} parent=5 // pred_fallthru
      _
    %p136 = scmp.le.s32.totalorder 1, %s9
    %p137 = scmp.lt.s32.totalorder %s9, 3
    %p138 = pnand %p136, %p137
    %p139 = pneg %p138
    // Predicated region
    $region29: #{tpu_custom_call.1} parent=5 // pred_check
      _
    $region30: #{tpu_custom_call.1} parent=5 // pred_check_branch
      %141 = sbr.rel (%p138) target = $region32
    $region31: #{tpu_custom_call.1} parent=5 // pred_region
      %s142 = ssub.s32 %s9, 1
      %p143 = scmp.lt.s32.totalorder %s14, 1
      %s144 = scalar_select %p143, %s14, 1
      %s145 = smul.addr %s144, 54
      %s146 = smul.addr %s145, 4
      %s147 = scalar_lea.vmem %s0, %s146
      %p148 = pneg %p35
      %p149 = pneg %p32
      %p150 = pneg %p56
      %p151 = pneg %p53
      %p152 = pneg %p77
      %p153 = pneg %p74
      %p154 = pneg %p103
      %p155 = pneg %p100
      %p156 = scmp.lt.s32.totalorder %s14, 1
      %s157 = scalar_select %p156, %s14, 1
      %s158 = smul.addr %s157, 32
      %s159 = smul.addr %s158, 8
      %s160 = scalar_lea.vmem %s3, %s159
      %p161 = scmp.lt.s32.totalorder %s14, 1
      %s162 = scalar_select %p161, %s14, 1
      %s163 = smul.addr %s162, 54
      %s164 = smul.addr %s163, 4
      %s165 = scalar_lea.vmem %s0, %s164
      %p166 = scmp.lt.s32.totalorder %s14, 1
      %s167 = scalar_select %p166, %s14, 1
      %s168 = smul.addr %s167, 32
      %s169 = smul.addr %s168, 8
      %s170 = scalar_lea.vmem %s3, %s169
      %v172 = vld [vmem:[%s165] sm:$0xf]
      %v173 = vld [vmem:[%s165 + $0x4] sm:$0xf]
      %v174 = vld [vmem:[%s165 + $0xc] sm:$0xf]
      %v175 = vld [vmem:[%s165 + $0x10] sm:$0xf]
      %v176 = vld [vmem:[%s165 + $0x18] sm:$0xf]
      %v177 = vld [vmem:[%s165 + $0x1c] sm:$0xf]
      %v178 = vld [vmem:[%s165 + $0x24] sm:$0xf]
      %v179 = vld [vmem:[%s165 + $0x28] sm:$0xf]
      %v180 = vld [vmem:[%s165 + $0x30] sm:$0xf]
      %v181 = vld [vmem:[%s165 + $0x34] sm:$0xf]
      %v182 = vld [vmem:[%s165 + $0x3c] sm:$0xf]
      %v183 = vld [vmem:[%s165 + $0x40] sm:$0xf]
      %v184 = vld [vmem:[%s165 + $0x48] sm:$0xf]
      %v185 = vld [vmem:[%s165 + $0x4c] sm:$0xf]
      %v186 = vld [vmem:[%s165 + $0x54] sm:$0xf]
      %v187 = vld [vmem:[%s165 + $0x58] sm:$0xf]
      %v188 = vld [vmem:[%s165 + $0x60] sm:$0xf]
      %v189 = vld [vmem:[%s165 + $0x64] sm:$0xf]
      %v190 = vld [vmem:[%s165 + $0x6c] sm:$0xf]
      %v191 = vld [vmem:[%s165 + $0x70] sm:$0xf]
      %v192 = vld [vmem:[%s165 + $0x78] sm:$0xf]
      %v193 = vld [vmem:[%s165 + $0x7c] sm:$0xf]
      %v194 = vld [vmem:[%s165 + $0x84] sm:$0xf]
      %v195 = vld [vmem:[%s165 + $0x88] sm:$0xf]
      %v196 = vld [vmem:[%s165 + $0x90] sm:$0xf]
      %v197 = vld [vmem:[%s165 + $0x94] sm:$0xf]
      %v198 = vld [vmem:[%s165 + $0x9c] sm:$0xf]
      %v199 = vld [vmem:[%s165 + $0xa0] sm:$0xf]
      %v200 = vld [vmem:[%s165 + $0xa8] sm:$0xf]
      %v201 = vld [vmem:[%s165 + $0xac] sm:$0xf]
      %v202 = vld [vmem:[%s165 + $0xb4] sm:$0xf]
      %v203 = vld [vmem:[%s165 + $0xb8] sm:$0xf]
      %v204 = vld [vmem:[%s165 + $0x8] sm:$0x1]
      %v205 = vld [vmem:[%s165 + $0x14] sm:$0x1]
      %v206 = vld [vmem:[%s165 + $0x20] sm:$0x1]
      %v207 = vld [vmem:[%s165 + $0x2c] sm:$0x1]
      %v208 = vld [vmem:[%s165 + $0x38] sm:$0x1]
      %v209 = vld [vmem:[%s165 + $0x44] sm:$0x1]
      %v210 = vld [vmem:[%s165 + $0x50] sm:$0x1]
      %v211 = vld [vmem:[%s165 + $0x5c] sm:$0x1]
      %v212 = vld [vmem:[%s165 + $0x68] sm:$0x1]
      %v213 = vld [vmem:[%s165 + $0x74] sm:$0x1]
      %v214 = vld [vmem:[%s165 + $0x80] sm:$0x1]
      %v215 = vld [vmem:[%s165 + $0x8c] sm:$0x1]
      %v216 = vld [vmem:[%s165 + $0x98] sm:$0x1]
      %v217 = vld [vmem:[%s165 + $0xa4] sm:$0x1]
      %v218 = vld [vmem:[%s165 + $0xb0] sm:$0x1]
      %v219 = vld [vmem:[%s165 + $0xbc] sm:$0x1]
      %vm220 = vsmask.f32 3328
      %vm221 = vsmask.f32 7440
      %vm222 = vmor %vm220, %vm221
      %v224 = vshrl.u32 %v172, 16
      %v226 = vrot.slane %v224, 4
      %v227 = vshll.u32 %v172, 16
      %v229 = vrot.slane %v227, 5
      %v230 = vor.u32 %v226, %v229
      %v231 = vrot.slane %v230, 4
      %v233 = vshll.u32 %v173, 16
      %v235 = vrot.slane %v233, 5
      %v236 = vsel %vm222, %v231, %v235
      %v237 = vshrl.u32 %v173, 16
      %v239 = vrot.slane %v237, 4
      %v240 = vor.u32 %v239, %v235
      %v241 = vrot.slane %v240, 4
      %v243 = vshll.u32 %v204, 16
      %v245 = vrot.slane %v243, 5
      %v246 = vsel %vm222, %v241, %v245
      %v248 = vshrl.u32 %v174, 16
      %v250 = vrot.slane %v248, 4
      %v251 = vshll.u32 %v174, 16
      %v253 = vrot.slane %v251, 5
      %v254 = vor.u32 %v250, %v253
      %v255 = vrot.slane %v254, 4
      %v257 = vshll.u32 %v175, 16
      %v259 = vrot.slane %v257, 5
      %v260 = vsel %vm222, %v255, %v259
      %v261 = vshrl.u32 %v175, 16
      %v263 = vrot.slane %v261, 4
      %v264 = vor.u32 %v263, %v259
      %v265 = vrot.slane %v264, 4
      %v267 = vshll.u32 %v205, 16
      %v269 = vrot.slane %v267, 5
      %v270 = vsel %vm222, %v265, %v269
      %v272 = vshrl.u32 %v176, 16
      %v274 = vrot.slane %v272, 4
      %v275 = vshll.u32 %v176, 16
      %v277 = vrot.slane %v275, 5
      %v278 = vor.u32 %v274, %v277
      %v279 = vrot.slane %v278, 4
      %v281 = vshll.u32 %v177, 16
      %v283 = vrot.slane %v281, 5
      %v284 = vsel %vm222, %v279, %v283
      %v285 = vshrl.u32 %v177, 16
      %v287 = vrot.slane %v285, 4
      %v288 = vor.u32 %v287, %v283
      %v289 = vrot.slane %v288, 4
      %v291 = vshll.u32 %v206, 16
      %v293 = vrot.slane %v291, 5
      %v294 = vsel %vm222, %v289, %v293
      %v296 = vshrl.u32 %v178, 16
      %v298 = vrot.slane %v296, 4
      %v299 = vshll.u32 %v178, 16
      %v301 = vrot.slane %v299, 5
      %v302 = vor.u32 %v298, %v301
      %v303 = vrot.slane %v302, 4
      %v305 = vshll.u32 %v179, 16
      %v307 = vrot.slane %v305, 5
      %v308 = vsel %vm222, %v303, %v307
      %v309 = vshrl.u32 %v179, 16
      %v311 = vrot.slane %v309, 4
      %v312 = vor.u32 %v311, %v307
      %v313 = vrot.slane %v312, 4
      %v315 = vshll.u32 %v207, 16
      %v317 = vrot.slane %v315, 5
      %v318 = vsel %vm222, %v313, %v317
      %v320 = vshrl.u32 %v180, 16
      %v322 = vrot.slane %v320, 4
      %v323 = vshll.u32 %v180, 16
      %v325 = vrot.slane %v323, 5
      %v326 = vor.u32 %v322, %v325
      %v327 = vrot.slane %v326, 4
      %v329 = vshll.u32 %v181, 16
      %v331 = vrot.slane %v329, 5
      %v332 = vsel %vm222, %v327, %v331
      %v333 = vshrl.u32 %v181, 16
      %v335 = vrot.slane %v333, 4
      %v336 = vor.u32 %v335, %v331
      %v337 = vrot.slane %v336, 4
      %v339 = vshll.u32 %v208, 16
      %v341 = vrot.slane %v339, 5
      %v342 = vsel %vm222, %v337, %v341
      %v344 = vshrl.u32 %v182, 16
      %v346 = vrot.slane %v344, 4
      %v347 = vshll.u32 %v182, 16
      %v349 = vrot.slane %v347, 5
      %v350 = vor.u32 %v346, %v349
      %v351 = vrot.slane %v350, 4
      %v353 = vshll.u32 %v183, 16
      %v355 = vrot.slane %v353, 5
      %v356 = vsel %vm222, %v351, %v355
      %v357 = vshrl.u32 %v183, 16
      %v359 = vrot.slane %v357, 4
      %v360 = vor.u32 %v359, %v355
      %v361 = vrot.slane %v360, 4
      %v363 = vshll.u32 %v209, 16
      %v365 = vrot.slane %v363, 5
      %v366 = vsel %vm222, %v361, %v365
      %v368 = vshrl.u32 %v184, 16
      %v370 = vrot.slane %v368, 4
      %v371 = vshll.u32 %v184, 16
      %v373 = vrot.slane %v371, 5
      %v374 = vor.u32 %v370, %v373
      %v375 = vrot.slane %v374, 4
      %v377 = vshll.u32 %v185, 16
      %v379 = vrot.slane %v377, 5
      %v380 = vsel %vm222, %v375, %v379
      %v381 = vshrl.u32 %v185, 16
      %v383 = vrot.slane %v381, 4
      %v384 = vor.u32 %v383, %v379
      %v385 = vrot.slane %v384, 4
      %v387 = vshll.u32 %v210, 16
      %v389 = vrot.slane %v387, 5
      %v390 = vsel %vm222, %v385, %v389
      %v392 = vshrl.u32 %v186, 16
      %v394 = vrot.slane %v392, 4
      %v395 = vshll.u32 %v186, 16
      %v397 = vrot.slane %v395, 5
      %v398 = vor.u32 %v394, %v397
      %v399 = vrot.slane %v398, 4
      %v401 = vshll.u32 %v187, 16
      %v403 = vrot.slane %v401, 5
      %v404 = vsel %vm222, %v399, %v403
      %v405 = vshrl.u32 %v187, 16
      %v407 = vrot.slane %v405, 4
      %v408 = vor.u32 %v407, %v403
      %v409 = vrot.slane %v408, 4
      %v411 = vshll.u32 %v211, 16
      %v413 = vrot.slane %v411, 5
      %v414 = vsel %vm222, %v409, %v413
      %v416 = vshrl.u32 %v188, 16
      %v418 = vrot.slane %v416, 4
      %v419 = vshll.u32 %v188, 16
      %v421 = vrot.slane %v419, 5
      %v422 = vor.u32 %v418, %v421
      %v423 = vrot.slane %v422, 4
      %v425 = vshll.u32 %v189, 16
      %v427 = vrot.slane %v425, 5
      %v428 = vsel %vm222, %v423, %v427
      %v429 = vshrl.u32 %v189, 16
      %v431 = vrot.slane %v429, 4
      %v432 = vor.u32 %v431, %v427
      %v433 = vrot.slane %v432, 4
      %v435 = vshll.u32 %v212, 16
      %v437 = vrot.slane %v435, 5
      %v438 = vsel %vm222, %v433, %v437
      %v440 = vshrl.u32 %v190, 16
      %v442 = vrot.slane %v440, 4
      %v443 = vshll.u32 %v190, 16
      %v445 = vrot.slane %v443, 5
      %v446 = vor.u32 %v442, %v445
      %v447 = vrot.slane %v446, 4
      %v449 = vshll.u32 %v191, 16
      %v451 = vrot.slane %v449, 5
      %v452 = vsel %vm222, %v447, %v451
      %v453 = vshrl.u32 %v191, 16
      %v455 = vrot.slane %v453, 4
      %v456 = vor.u32 %v455, %v451
      %v457 = vrot.slane %v456, 4
      %v459 = vshll.u32 %v213, 16
      %v461 = vrot.slane %v459, 5
      %v462 = vsel %vm222, %v457, %v461
      %v464 = vshrl.u32 %v192, 16
      %v466 = vrot.slane %v464, 4
      %v467 = vshll.u32 %v192, 16
      %v469 = vrot.slane %v467, 5
      %v470 = vor.u32 %v466, %v469
      %v471 = vrot.slane %v470, 4
      %v473 = vshll.u32 %v193, 16
      %v475 = vrot.slane %v473, 5
      %v476 = vsel %vm222, %v471, %v475
      %v477 = vshrl.u32 %v193, 16
      %v479 = vrot.slane %v477, 4
      %v480 = vor.u32 %v479, %v475
      %v481 = vrot.slane %v480, 4
      %v483 = vshll.u32 %v214, 16
      %v485 = vrot.slane %v483, 5
      %v486 = vsel %vm222, %v481, %v485
      %v488 = vshrl.u32 %v194, 16
      %v490 = vrot.slane %v488, 4
      %v491 = vshll.u32 %v194, 16
      %v493 = vrot.slane %v491, 5
      %v494 = vor.u32 %v490, %v493
      %v495 = vrot.slane %v494, 4
      %v497 = vshll.u32 %v195, 16
      %v499 = vrot.slane %v497, 5
      %v500 = vsel %vm222, %v495, %v499
      %v501 = vshrl.u32 %v195, 16
      %v503 = vrot.slane %v501, 4
      %v504 = vor.u32 %v503, %v499
      %v505 = vrot.slane %v504, 4
      %v507 = vshll.u32 %v215, 16
      %v509 = vrot.slane %v507, 5
      %v510 = vsel %vm222, %v505, %v509
      %v512 = vshrl.u32 %v196, 16
      %v514 = vrot.slane %v512, 4
      %v515 = vshll.u32 %v196, 16
      %v517 = vrot.slane %v515, 5
      %v518 = vor.u32 %v514, %v517
      %v519 = vrot.slane %v518, 4
      %v521 = vshll.u32 %v197, 16
      %v523 = vrot.slane %v521, 5
      %v524 = vsel %vm222, %v519, %v523
      %v525 = vshrl.u32 %v197, 16
      %v527 = vrot.slane %v525, 4
      %v528 = vor.u32 %v527, %v523
      %v529 = vrot.slane %v528, 4
      %v531 = vshll.u32 %v216, 16
      %v533 = vrot.slane %v531, 5
      %v534 = vsel %vm222, %v529, %v533
      %v536 = vshrl.u32 %v198, 16
      %v538 = vrot.slane %v536, 4
      %v539 = vshll.u32 %v198, 16
      %v541 = vrot.slane %v539, 5
      %v542 = vor.u32 %v538, %v541
      %v543 = vrot.slane %v542, 4
      %v545 = vshll.u32 %v199, 16
      %v547 = vrot.slane %v545, 5
      %v548 = vsel %vm222, %v543, %v547
      %v549 = vshrl.u32 %v199, 16
      %v551 = vrot.slane %v549, 4
      %v552 = vor.u32 %v551, %v547
      %v553 = vrot.slane %v552, 4
      %v555 = vshll.u32 %v217, 16
      %v557 = vrot.slane %v555, 5
      %v558 = vsel %vm222, %v553, %v557
      %v560 = vshrl.u32 %v200, 16
      %v562 = vrot.slane %v560, 4
      %v563 = vshll.u32 %v200, 16
      %v565 = vrot.slane %v563, 5
      %v566 = vor.u32 %v562, %v565
      %v567 = vrot.slane %v566, 4
      %v569 = vshll.u32 %v201, 16
      %v571 = vrot.slane %v569, 5
      %v572 = vsel %vm222, %v567, %v571
      %v573 = vshrl.u32 %v201, 16
      %v575 = vrot.slane %v573, 4
      %v576 = vor.u32 %v575, %v571
      %v577 = vrot.slane %v576, 4
      %v579 = vshll.u32 %v218, 16
      %v581 = vrot.slane %v579, 5
      %v582 = vsel %vm222, %v577, %v581
      %v584 = vshrl.u32 %v202, 16
      %v586 = vrot.slane %v584, 4
      %v587 = vshll.u32 %v202, 16
      %v589 = vrot.slane %v587, 5
      %v590 = vor.u32 %v586, %v589
      %v591 = vrot.slane %v590, 4
      %v593 = vshll.u32 %v203, 16
      %v595 = vrot.slane %v593, 5
      %v596 = vsel %vm222, %v591, %v595
      %v597 = vshrl.u32 %v203, 16
      %v599 = vrot.slane %v597, 4
      %v600 = vor.u32 %v599, %v595
      %v601 = vrot.slane %v600, 4
      %v603 = vshll.u32 %v219, 16
      %v605 = vrot.slane %v603, 5
      %v606 = vsel %vm222, %v601, %v605
      %v607 = vld [vmem:[%s165] sm:$0xe]
      %v608 = vld [vmem:[%s165 + $0xc] sm:$0xe]
      %v609 = vld [vmem:[%s165 + $0x18] sm:$0xe]
      %v610 = vld [vmem:[%s165 + $0x24] sm:$0xe]
      %v611 = vld [vmem:[%s165 + $0x30] sm:$0xe]
      %v612 = vld [vmem:[%s165 + $0x3c] sm:$0xe]
      %v613 = vld [vmem:[%s165 + $0x48] sm:$0xe]
      %v614 = vld [vmem:[%s165 + $0x54] sm:$0xe]
      %v615 = vld [vmem:[%s165 + $0x60] sm:$0xe]
      %v616 = vld [vmem:[%s165 + $0x6c] sm:$0xe]
      %v617 = vld [vmem:[%s165 + $0x78] sm:$0xe]
      %v618 = vld [vmem:[%s165 + $0x84] sm:$0xe]
      %v619 = vld [vmem:[%s165 + $0x90] sm:$0xe]
      %v620 = vld [vmem:[%s165 + $0x9c] sm:$0xe]
      %v621 = vld [vmem:[%s165 + $0xa8] sm:$0xe]
      %v622 = vld [vmem:[%s165 + $0xb4] sm:$0xe]
      %vm671 = vcmask 1042432
      %vm672 = vcmask 1046532
      %vm673 = vmor %vm671, %vm672
      %v674 = vrot.slane %v607, 5
      %v675 = vrot.slane %v674, 4
      %v676 = vrot.slane %v173, 5
      %v677 = vsel %vm673, %v675, %v676
      %v678 = vrot.slane %v676, 4
      %v679 = vrot.slane %v204, 5
      %v680 = vsel %vm673, %v678, %v679
      %v681 = vrot.slane %v608, 5
      %v682 = vrot.slane %v681, 4
      %v683 = vrot.slane %v175, 5
      %v684 = vsel %vm673, %v682, %v683
      %v685 = vrot.slane %v683, 4
      %v686 = vrot.slane %v205, 5
      %v687 = vsel %vm673, %v685, %v686
      %v688 = vrot.slane %v609, 5
      %v689 = vrot.slane %v688, 4
      %v690 = vrot.slane %v177, 5
      %v691 = vsel %vm673, %v689, %v690
      %v692 = vrot.slane %v690, 4
      %v693 = vrot.slane %v206, 5
      %v694 = vsel %vm673, %v692, %v693
      %v695 = vrot.slane %v610, 5
      %v696 = vrot.slane %v695, 4
      %v697 = vrot.slane %v179, 5
      %v698 = vsel %vm673, %v696, %v697
      %v699 = vrot.slane %v697, 4
      %v700 = vrot.slane %v207, 5
      %v701 = vsel %vm673, %v699, %v700
      %v702 = vrot.slane %v611, 5
      %v703 = vrot.slane %v702, 4
      %v704 = vrot.slane %v181, 5
      %v705 = vsel %vm673, %v703, %v704
      %v706 = vrot.slane %v704, 4
      %v707 = vrot.slane %v208, 5
      %v708 = vsel %vm673, %v706, %v707
      %v709 = vrot.slane %v612, 5
      %v710 = vrot.slane %v709, 4
      %v711 = vrot.slane %v183, 5
      %v712 = vsel %vm673, %v710, %v711
      %v713 = vrot.slane %v711, 4
      %v714 = vrot.slane %v209, 5
      %v715 = vsel %vm673, %v713, %v714
      %v716 = vrot.slane %v613, 5
      %v717 = vrot.slane %v716, 4
      %v718 = vrot.slane %v185, 5
      %v719 = vsel %vm673, %v717, %v718
      %v720 = vrot.slane %v718, 4
      %v721 = vrot.slane %v210, 5
      %v722 = vsel %vm673, %v720, %v721
      %v723 = vrot.slane %v614, 5
      %v724 = vrot.slane %v723, 4
      %v725 = vrot.slane %v187, 5
      %v726 = vsel %vm673, %v724, %v725
      %v727 = vrot.slane %v725, 4
      %v728 = vrot.slane %v211, 5
      %v729 = vsel %vm673, %v727, %v728
      %v730 = vrot.slane %v615, 5
      %v731 = vrot.slane %v730, 4
      %v732 = vrot.slane %v189, 5
      %v733 = vsel %vm673, %v731, %v732
      %v734 = vrot.slane %v732, 4
      %v735 = vrot.slane %v212, 5
      %v736 = vsel %vm673, %v734, %v735
      %v737 = vrot.slane %v616, 5
      %v738 = vrot.slane %v737, 4
      %v739 = vrot.slane %v191, 5
      %v740 = vsel %vm673, %v738, %v739
      %v741 = vrot.slane %v739, 4
      %v742 = vrot.slane %v213, 5
      %v743 = vsel %vm673, %v741, %v742
      %v744 = vrot.slane %v617, 5
      %v745 = vrot.slane %v744, 4
      %v746 = vrot.slane %v193, 5
      %v747 = vsel %vm673, %v745, %v746
      %v748 = vrot.slane %v746, 4
      %v749 = vrot.slane %v214, 5
      %v750 = vsel %vm673, %v748, %v749
      %v751 = vrot.slane %v618, 5
      %v752 = vrot.slane %v751, 4
      %v753 = vrot.slane %v195, 5
      %v754 = vsel %vm673, %v752, %v753
      %v755 = vrot.slane %v753, 4
      %v756 = vrot.slane %v215, 5
      %v757 = vsel %vm673, %v755, %v756
      %v758 = vrot.slane %v619, 5
      %v759 = vrot.slane %v758, 4
      %v760 = vrot.slane %v197, 5
      %v761 = vsel %vm673, %v759, %v760
      %v762 = vrot.slane %v760, 4
      %v763 = vrot.slane %v216, 5
      %v764 = vsel %vm673, %v762, %v763
      %v765 = vrot.slane %v620, 5
      %v766 = vrot.slane %v765, 4
      %v767 = vrot.slane %v199, 5
      %v768 = vsel %vm673, %v766, %v767
      %v769 = vrot.slane %v767, 4
      %v770 = vrot.slane %v217, 5
      %v771 = vsel %vm673, %v769, %v770
      %v772 = vrot.slane %v621, 5
      %v773 = vrot.slane %v772, 4
      %v774 = vrot.slane %v201, 5
      %v775 = vsel %vm673, %v773, %v774
      %v776 = vrot.slane %v774, 4
      %v777 = vrot.slane %v218, 5
      %v778 = vsel %vm673, %v776, %v777
      %v779 = vrot.slane %v622, 5
      %v780 = vrot.slane %v779, 4
      %v781 = vrot.slane %v203, 5
      %v782 = vsel %vm673, %v780, %v781
      %v783 = vrot.slane %v781, 4
      %v784 = vrot.slane %v219, 5
      %v785 = vsel %vm673, %v783, %v784
      %v802 = vunpack.c.l.b16 %v172
      %v803 = vunpack.c.l.b16 %v173
      %v804 = vunpack.c.l.b16 %v174
      %v805 = vunpack.c.l.b16 %v175
      %v806 = vunpack.c.l.b16 %v176
      %v807 = vunpack.c.l.b16 %v177
      %v808 = vunpack.c.l.b16 %v178
      %v809 = vunpack.c.l.b16 %v179
      %v810 = vunpack.c.l.b16 %v180
      %v811 = vunpack.c.l.b16 %v181
      %v812 = vunpack.c.l.b16 %v182
      %v813 = vunpack.c.l.b16 %v183
      %v814 = vunpack.c.l.b16 %v184
      %v815 = vunpack.c.l.b16 %v185
      %v816 = vunpack.c.l.b16 %v186
      %v817 = vunpack.c.l.b16 %v187
      %v818 = vunpack.c.l.b16 %v188
      %v819 = vunpack.c.l.b16 %v189
      %v820 = vunpack.c.l.b16 %v190
      %v821 = vunpack.c.l.b16 %v191
      %v822 = vunpack.c.l.b16 %v192
      %v823 = vunpack.c.l.b16 %v193
      %v824 = vunpack.c.l.b16 %v194
      %v825 = vunpack.c.l.b16 %v195
      %v826 = vunpack.c.l.b16 %v196
      %v827 = vunpack.c.l.b16 %v197
      %v828 = vunpack.c.l.b16 %v198
      %v829 = vunpack.c.l.b16 %v199
      %v830 = vunpack.c.l.b16 %v200
      %v831 = vunpack.c.l.b16 %v201
      %v832 = vunpack.c.l.b16 %v202
      %v833 = vunpack.c.l.b16 %v203
      %v834 = vpack.c.b16 %v803, %v802
      %v835 = vpack.c.b16 %v805, %v804
      %v836 = vpack.c.b16 %v807, %v806
      %v837 = vpack.c.b16 %v809, %v808
      %v838 = vpack.c.b16 %v811, %v810
      %v839 = vpack.c.b16 %v813, %v812
      %v840 = vpack.c.b16 %v815, %v814
      %v841 = vpack.c.b16 %v817, %v816
      %v842 = vpack.c.b16 %v819, %v818
      %v843 = vpack.c.b16 %v821, %v820
      %v844 = vpack.c.b16 %v823, %v822
      %v845 = vpack.c.b16 %v825, %v824
      %v846 = vpack.c.b16 %v827, %v826
      %v847 = vpack.c.b16 %v829, %v828
      %v848 = vpack.c.b16 %v831, %v830
      %v849 = vpack.c.b16 %v833, %v832
      %v850 = vunpack.c.l.b16 %v236
      %v851 = vunpack.c.l.b16 %v246
      %v852 = vunpack.c.l.b16 %v260
      %v853 = vunpack.c.l.b16 %v270
      %v854 = vunpack.c.l.b16 %v284
      %v855 = vunpack.c.l.b16 %v294
      %v856 = vunpack.c.l.b16 %v308
      %v857 = vunpack.c.l.b16 %v318
      %v858 = vunpack.c.l.b16 %v332
      %v859 = vunpack.c.l.b16 %v342
      %v860 = vunpack.c.l.b16 %v356
      %v861 = vunpack.c.l.b16 %v366
      %v862 = vunpack.c.l.b16 %v380
      %v863 = vunpack.c.l.b16 %v390
      %v864 = vunpack.c.l.b16 %v404
      %v865 = vunpack.c.l.b16 %v414
      %v866 = vunpack.c.l.b16 %v428
      %v867 = vunpack.c.l.b16 %v438
      %v868 = vunpack.c.l.b16 %v452
      %v869 = vunpack.c.l.b16 %v462
      %v870 = vunpack.c.l.b16 %v476
      %v871 = vunpack.c.l.b16 %v486
      %v872 = vunpack.c.l.b16 %v500
      %v873 = vunpack.c.l.b16 %v510
      %v874 = vunpack.c.l.b16 %v524
      %v875 = vunpack.c.l.b16 %v534
      %v876 = vunpack.c.l.b16 %v548
      %v877 = vunpack.c.l.b16 %v558
      %v878 = vunpack.c.l.b16 %v572
      %v879 = vunpack.c.l.b16 %v582
      %v880 = vunpack.c.l.b16 %v596
      %v881 = vunpack.c.l.b16 %v606
      %v882 = vpack.c.b16 %v851, %v850
      %v883 = vpack.c.b16 %v853, %v852
      %v884 = vpack.c.b16 %v855, %v854
      %v885 = vpack.c.b16 %v857, %v856
      %v886 = vpack.c.b16 %v859, %v858
      %v887 = vpack.c.b16 %v861, %v860
      %v888 = vpack.c.b16 %v863, %v862
      %v889 = vpack.c.b16 %v865, %v864
      %v890 = vpack.c.b16 %v867, %v866
      %v891 = vpack.c.b16 %v869, %v868
      %v892 = vpack.c.b16 %v871, %v870
      %v893 = vpack.c.b16 %v873, %v872
      %v894 = vpack.c.b16 %v875, %v874
      %v895 = vpack.c.b16 %v877, %v876
      %v896 = vpack.c.b16 %v879, %v878
      %v897 = vpack.c.b16 %v881, %v880
      %898 = vrot.lane.b32.xlu0 %v882, 4
      %v899 = vpop.permute.xlu0 %898
      %900 = vrot.lane.b32.xlu0 %v883, 4
      %v901 = vpop.permute.xlu0 %900
      %902 = vrot.lane.b32.xlu0 %v884, 4
      %v903 = vpop.permute.xlu0 %902
      %904 = vrot.lane.b32.xlu0 %v885, 4
      %v905 = vpop.permute.xlu0 %904
      %906 = vrot.lane.b32.xlu0 %v886, 4
      %v907 = vpop.permute.xlu0 %906
      %908 = vrot.lane.b32.xlu0 %v887, 4
      %v909 = vpop.permute.xlu0 %908
      %910 = vrot.lane.b32.xlu0 %v888, 4
      %v911 = vpop.permute.xlu0 %910
      %912 = vrot.lane.b32.xlu0 %v889, 4
      %v913 = vpop.permute.xlu0 %912
      %914 = vrot.lane.b32.xlu0 %v890, 4
      %v915 = vpop.permute.xlu0 %914
      %916 = vrot.lane.b32.xlu0 %v891, 4
      %v917 = vpop.permute.xlu0 %916
      %918 = vrot.lane.b32.xlu0 %v892, 4
      %v919 = vpop.permute.xlu0 %918
      %920 = vrot.lane.b32.xlu0 %v893, 4
      %v921 = vpop.permute.xlu0 %920
      %922 = vrot.lane.b32.xlu0 %v894, 4
      %v923 = vpop.permute.xlu0 %922
      %924 = vrot.lane.b32.xlu0 %v895, 4
      %v925 = vpop.permute.xlu0 %924
      %926 = vrot.lane.b32.xlu0 %v896, 4
      %v927 = vpop.permute.xlu0 %926
      %928 = vrot.lane.b32.xlu0 %v897, 4
      %v929 = vpop.permute.xlu0 %928
      %v930 = vunpack.c.l.b16 %v677
      %v931 = vunpack.c.l.b16 %v680
      %v932 = vunpack.c.l.b16 %v684
      %v933 = vunpack.c.l.b16 %v687
      %v934 = vunpack.c.l.b16 %v691
      %v935 = vunpack.c.l.b16 %v694
      %v936 = vunpack.c.l.b16 %v698
      %v937 = vunpack.c.l.b16 %v701
      %v938 = vunpack.c.l.b16 %v705
      %v939 = vunpack.c.l.b16 %v708
      %v940 = vunpack.c.l.b16 %v712
      %v941 = vunpack.c.l.b16 %v715
      %v942 = vunpack.c.l.b16 %v719
      %v943 = vunpack.c.l.b16 %v722
      %v944 = vunpack.c.l.b16 %v726
      %v945 = vunpack.c.l.b16 %v729
      %v946 = vunpack.c.l.b16 %v733
      %v947 = vunpack.c.l.b16 %v736
      %v948 = vunpack.c.l.b16 %v740
      %v949 = vunpack.c.l.b16 %v743
      %v950 = vunpack.c.l.b16 %v747
      %v951 = vunpack.c.l.b16 %v750
      %v952 = vunpack.c.l.b16 %v754
      %v953 = vunpack.c.l.b16 %v757
      %v954 = vunpack.c.l.b16 %v761
      %v955 = vunpack.c.l.b16 %v764
      %v956 = vunpack.c.l.b16 %v768
      %v957 = vunpack.c.l.b16 %v771
      %v958 = vunpack.c.l.b16 %v775
      %v959 = vunpack.c.l.b16 %v778
      %v960 = vunpack.c.l.b16 %v782
      %v961 = vunpack.c.l.b16 %v785
      %v962 = vpack.c.b16 %v931, %v930
      %v963 = vpack.c.b16 %v933, %v932
      %v964 = vpack.c.b16 %v935, %v934
      %v965 = vpack.c.b16 %v937, %v936
      %v966 = vpack.c.b16 %v939, %v938
      %v967 = vpack.c.b16 %v941, %v940
      %v968 = vpack.c.b16 %v943, %v942
      %v969 = vpack.c.b16 %v945, %v944
      %v970 = vpack.c.b16 %v947, %v946
      %v971 = vpack.c.b16 %v949, %v948
      %v972 = vpack.c.b16 %v951, %v950
      %v973 = vpack.c.b16 %v953, %v952
      %v974 = vpack.c.b16 %v955, %v954
      %v975 = vpack.c.b16 %v957, %v956
      %v976 = vpack.c.b16 %v959, %v958
      %v977 = vpack.c.b16 %v961, %v960
      %978 = vrot.lane.b32.xlu0 %v962, 8
      %v979 = vpop.permute.xlu0 %978
      %980 = vrot.lane.b32.xlu0 %v963, 8
      %v981 = vpop.permute.xlu0 %980
      %982 = vrot.lane.b32.xlu0 %v964, 8
      %v983 = vpop.permute.xlu0 %982
      %984 = vrot.lane.b32.xlu0 %v965, 8
      %v985 = vpop.permute.xlu0 %984
      %986 = vrot.lane.b32.xlu0 %v966, 8
      %v987 = vpop.permute.xlu0 %986
      %988 = vrot.lane.b32.xlu0 %v967, 8
      %v989 = vpop.permute.xlu0 %988
      %990 = vrot.lane.b32.xlu0 %v968, 8
      %v991 = vpop.permute.xlu0 %990
      %992 = vrot.lane.b32.xlu0 %v969, 8
      %v993 = vpop.permute.xlu0 %992
      %994 = vrot.lane.b32.xlu0 %v970, 8
      %v995 = vpop.permute.xlu0 %994
      %996 = vrot.lane.b32.xlu0 %v971, 8
      %v997 = vpop.permute.xlu0 %996
      %998 = vrot.lane.b32.xlu0 %v972, 8
      %v999 = vpop.permute.xlu0 %998
      %1000 = vrot.lane.b32.xlu0 %v973, 8
      %v1001 = vpop.permute.xlu0 %1000
      %1002 = vrot.lane.b32.xlu0 %v974, 8
      %v1003 = vpop.permute.xlu0 %1002
      %1004 = vrot.lane.b32.xlu0 %v975, 8
      %v1005 = vpop.permute.xlu0 %1004
      %1006 = vrot.lane.b32.xlu0 %v976, 8
      %v1007 = vpop.permute.xlu0 %1006
      %1008 = vrot.lane.b32.xlu0 %v977, 8
      %v1009 = vpop.permute.xlu0 %1008
      %vm1010 = vcmask 31744
      %v1013 = vsel %vm1010, %v834, %v899
      %v1016 = vsel %vm1010, %v835, %v901
      %v1019 = vsel %vm1010, %v836, %v903
      %v1022 = vsel %vm1010, %v837, %v905
      %v1025 = vsel %vm1010, %v838, %v907
      %v1028 = vsel %vm1010, %v839, %v909
      %v1031 = vsel %vm1010, %v840, %v911
      %v1034 = vsel %vm1010, %v841, %v913
      %v1037 = vsel %vm1010, %v842, %v915
      %v1040 = vsel %vm1010, %v843, %v917
      %v1043 = vsel %vm1010, %v844, %v919
      %v1046 = vsel %vm1010, %v845, %v921
      %v1049 = vsel %vm1010, %v846, %v923
      %v1052 = vsel %vm1010, %v847, %v925
      %v1055 = vsel %vm1010, %v848, %v927
      %v1058 = vsel %vm1010, %v849, %v929
      %vm1059 = vcmask 64512
      %v1061 = vsel %vm1059, %v1013, %v979
      %v1063 = vsel %vm1059, %v1016, %v981
      %v1065 = vsel %vm1059, %v1019, %v983
      %v1067 = vsel %vm1059, %v1022, %v985
      %v1069 = vsel %vm1059, %v1025, %v987
      %v1071 = vsel %vm1059, %v1028, %v989
      %v1073 = vsel %vm1059, %v1031, %v991
      %v1075 = vsel %vm1059, %v1034, %v993
      %v1077 = vsel %vm1059, %v1037, %v995
      %v1079 = vsel %vm1059, %v1040, %v997
      %v1081 = vsel %vm1059, %v1043, %v999
      %v1083 = vsel %vm1059, %v1046, %v1001
      %v1085 = vsel %vm1059, %v1049, %v1003
      %v1087 = vsel %vm1059, %v1052, %v1005
      %v1089 = vsel %vm1059, %v1055, %v1007
      %v1091 = vsel %vm1059, %v1058, %v1009
      %v1092 = vld [vmem:[%s1] sm:$0xf]
      %v1093 = vld [vmem:[%s1 + $0x4] sm:$0x3]
      %s1094 = scalar_lea.vmem %s165, 12
      %v1095 = vld [vmem:[%s1094] sm:$0xf]
      %v1096 = vld [vmem:[%s1094 + $0x4] sm:$0xf]
      %v1097 = vld [vmem:[%s1094 + $0xc] sm:$0xf]
      %v1098 = vld [vmem:[%s1094 + $0x10] sm:$0xf]
      %v1099 = vld [vmem:[%s1094 + $0x18] sm:$0xf]
      %v1100 = vld [vmem:[%s1094 + $0x1c] sm:$0xf]
      %v1101 = vld [vmem:[%s1094 + $0x24] sm:$0xf]
      %v1102 = vld [vmem:[%s1094 + $0x28] sm:$0xf]
      %v1103 = vld [vmem:[%s1094 + $0x30] sm:$0xf]
      %v1104 = vld [vmem:[%s1094 + $0x34] sm:$0xf]
      %v1105 = vld [vmem:[%s1094 + $0x3c] sm:$0xf]
      %v1106 = vld [vmem:[%s1094 + $0x40] sm:$0xf]
      %v1107 = vld [vmem:[%s1094 + $0x48] sm:$0xf]
      %v1108 = vld [vmem:[%s1094 + $0x4c] sm:$0xf]
      %v1109 = vld [vmem:[%s1094 + $0x54] sm:$0xf]
      %v1110 = vld [vmem:[%s1094 + $0x58] sm:$0xf]
      %v1111 = vld [vmem:[%s1094 + $0x60] sm:$0xf]
      %v1112 = vld [vmem:[%s1094 + $0x64] sm:$0xf]
      %v1113 = vld [vmem:[%s1094 + $0x6c] sm:$0xf]
      %v1114 = vld [vmem:[%s1094 + $0x70] sm:$0xf]
      %v1115 = vld [vmem:[%s1094 + $0x78] sm:$0xf]
      %v1116 = vld [vmem:[%s1094 + $0x7c] sm:$0xf]
      %v1117 = vld [vmem:[%s1094 + $0x84] sm:$0xf]
      %v1118 = vld [vmem:[%s1094 + $0x88] sm:$0xf]
      %v1119 = vld [vmem:[%s1094 + $0x90] sm:$0xf]
      %v1120 = vld [vmem:[%s1094 + $0x94] sm:$0xf]
      %v1121 = vld [vmem:[%s1094 + $0x9c] sm:$0xf]
      %v1122 = vld [vmem:[%s1094 + $0xa0] sm:$0xf]
      %v1123 = vld [vmem:[%s1094 + $0xa8] sm:$0xf]
      %v1124 = vld [vmem:[%s1094 + $0xac] sm:$0xf]
      %v1125 = vld [vmem:[%s1094 + $0xb4] sm:$0xf]
      %v1126 = vld [vmem:[%s1094 + $0xb8] sm:$0xf]
      %v1127 = vld [vmem:[%s1094 + $0x8] sm:$0x1]
      %v1128 = vld [vmem:[%s1094 + $0x14] sm:$0x1]
      %v1129 = vld [vmem:[%s1094 + $0x20] sm:$0x1]
      %v1130 = vld [vmem:[%s1094 + $0x2c] sm:$0x1]
      %v1131 = vld [vmem:[%s1094 + $0x38] sm:$0x1]
      %v1132 = vld [vmem:[%s1094 + $0x44] sm:$0x1]
      %v1133 = vld [vmem:[%s1094 + $0x50] sm:$0x1]
      %v1134 = vld [vmem:[%s1094 + $0x5c] sm:$0x1]
      %v1135 = vld [vmem:[%s1094 + $0x68] sm:$0x1]
      %v1136 = vld [vmem:[%s1094 + $0x74] sm:$0x1]
      %v1137 = vld [vmem:[%s1094 + $0x80] sm:$0x1]
      %v1138 = vld [vmem:[%s1094 + $0x8c] sm:$0x1]
      %v1139 = vld [vmem:[%s1094 + $0x98] sm:$0x1]
      %v1140 = vld [vmem:[%s1094 + $0xa4] sm:$0x1]
      %v1141 = vld [vmem:[%s1094 + $0xb0] sm:$0x1]
      %v1142 = vld [vmem:[%s1094 + $0xbc] sm:$0x1]
      %v1144 = vshrl.u32 %v1095, 16
      %v1146 = vrot.slane %v1144, 4
      %v1147 = vshll.u32 %v1095, 16
      %v1149 = vrot.slane %v1147, 5
      %v1150 = vor.u32 %v1146, %v1149
      %v1151 = vrot.slane %v1150, 4
      %v1153 = vshll.u32 %v1096, 16
      %v1155 = vrot.slane %v1153, 5
      %v1156 = vsel %vm222, %v1151, %v1155
      %v1157 = vshrl.u32 %v1096, 16
      %v1159 = vrot.slane %v1157, 4
      %v1160 = vor.u32 %v1159, %v1155
      %v1161 = vrot.slane %v1160, 4
      %v1163 = vshll.u32 %v1127, 16
      %v1165 = vrot.slane %v1163, 5
      %v1166 = vsel %vm222, %v1161, %v1165
      %v1168 = vshrl.u32 %v1097, 16
      %v1170 = vrot.slane %v1168, 4
      %v1171 = vshll.u32 %v1097, 16
      %v1173 = vrot.slane %v1171, 5
      %v1174 = vor.u32 %v1170, %v1173
      %v1175 = vrot.slane %v1174, 4
      %v1177 = vshll.u32 %v1098, 16
      %v1179 = vrot.slane %v1177, 5
      %v1180 = vsel %vm222, %v1175, %v1179
      %v1181 = vshrl.u32 %v1098, 16
      %v1183 = vrot.slane %v1181, 4
      %v1184 = vor.u32 %v1183, %v1179
      %v1185 = vrot.slane %v1184, 4
      %v1187 = vshll.u32 %v1128, 16
      %v1189 = vrot.slane %v1187, 5
      %v1190 = vsel %vm222, %v1185, %v1189
      %v1192 = vshrl.u32 %v1099, 16
      %v1194 = vrot.slane %v1192, 4
      %v1195 = vshll.u32 %v1099, 16
      %v1197 = vrot.slane %v1195, 5
      %v1198 = vor.u32 %v1194, %v1197
      %v1199 = vrot.slane %v1198, 4
      %v1201 = vshll.u32 %v1100, 16
      %v1203 = vrot.slane %v1201, 5
      %v1204 = vsel %vm222, %v1199, %v1203
      %v1205 = vshrl.u32 %v1100, 16
      %v1207 = vrot.slane %v1205, 4
      %v1208 = vor.u32 %v1207, %v1203
      %v1209 = vrot.slane %v1208, 4
      %v1211 = vshll.u32 %v1129, 16
      %v1213 = vrot.slane %v1211, 5
      %v1214 = vsel %vm222, %v1209, %v1213
      %v1216 = vshrl.u32 %v1101, 16
      %v1218 = vrot.slane %v1216, 4
      %v1219 = vshll.u32 %v1101, 16
      %v1221 = vrot.slane %v1219, 5
      %v1222 = vor.u32 %v1218, %v1221
      %v1223 = vrot.slane %v1222, 4
      %v1225 = vshll.u32 %v1102, 16
      %v1227 = vrot.slane %v1225, 5
      %v1228 = vsel %vm222, %v1223, %v1227
      %v1229 = vshrl.u32 %v1102, 16
      %v1231 = vrot.slane %v1229, 4
      %v1232 = vor.u32 %v1231, %v1227
      %v1233 = vrot.slane %v1232, 4
      %v1235 = vshll.u32 %v1130, 16
      %v1237 = vrot.slane %v1235, 5
      %v1238 = vsel %vm222, %v1233, %v1237
      %v1240 = vshrl.u32 %v1103, 16
      %v1242 = vrot.slane %v1240, 4
      %v1243 = vshll.u32 %v1103, 16
      %v1245 = vrot.slane %v1243, 5
      %v1246 = vor.u32 %v1242, %v1245
      %v1247 = vrot.slane %v1246, 4
      %v1249 = vshll.u32 %v1104, 16
      %v1251 = vrot.slane %v1249, 5
      %v1252 = vsel %vm222, %v1247, %v1251
      %v1253 = vshrl.u32 %v1104, 16
      %v1255 = vrot.slane %v1253, 4
      %v1256 = vor.u32 %v1255, %v1251
      %v1257 = vrot.slane %v1256, 4
      %v1259 = vshll.u32 %v1131, 16
      %v1261 = vrot.slane %v1259, 5
      %v1262 = vsel %vm222, %v1257, %v1261
      %v1264 = vshrl.u32 %v1105, 16
      %v1266 = vrot.slane %v1264, 4
      %v1267 = vshll.u32 %v1105, 16
      %v1269 = vrot.slane %v1267, 5
      %v1270 = vor.u32 %v1266, %v1269
      %v1271 = vrot.slane %v1270, 4
      %v1273 = vshll.u32 %v1106, 16
      %v1275 = vrot.slane %v1273, 5
      %v1276 = vsel %vm222, %v1271, %v1275
      %v1277 = vshrl.u32 %v1106, 16
      %v1279 = vrot.slane %v1277, 4
      %v1280 = vor.u32 %v1279, %v1275
      %v1281 = vrot.slane %v1280, 4
      %v1283 = vshll.u32 %v1132, 16
      %v1285 = vrot.slane %v1283, 5
      %v1286 = vsel %vm222, %v1281, %v1285
      %v1288 = vshrl.u32 %v1107, 16
      %v1290 = vrot.slane %v1288, 4
      %v1291 = vshll.u32 %v1107, 16
      %v1293 = vrot.slane %v1291, 5
      %v1294 = vor.u32 %v1290, %v1293
      %v1295 = vrot.slane %v1294, 4
      %v1297 = vshll.u32 %v1108, 16
      %v1299 = vrot.slane %v1297, 5
      %v1300 = vsel %vm222, %v1295, %v1299
      %v1301 = vshrl.u32 %v1108, 16
      %v1303 = vrot.slane %v1301, 4
      %v1304 = vor.u32 %v1303, %v1299
      %v1305 = vrot.slane %v1304, 4
      %v1307 = vshll.u32 %v1133, 16
      %v1309 = vrot.slane %v1307, 5
      %v1310 = vsel %vm222, %v1305, %v1309
      %v1312 = vshrl.u32 %v1109, 16
      %v1314 = vrot.slane %v1312, 4
      %v1315 = vshll.u32 %v1109, 16
      %v1317 = vrot.slane %v1315, 5
      %v1318 = vor.u32 %v1314, %v1317
      %v1319 = vrot.slane %v1318, 4
      %v1321 = vshll.u32 %v1110, 16
      %v1323 = vrot.slane %v1321, 5
      %v1324 = vsel %vm222, %v1319, %v1323
      %v1325 = vshrl.u32 %v1110, 16
      %v1327 = vrot.slane %v1325, 4
      %v1328 = vor.u32 %v1327, %v1323
      %v1329 = vrot.slane %v1328, 4
      %v1331 = vshll.u32 %v1134, 16
      %v1333 = vrot.slane %v1331, 5
      %v1334 = vsel %vm222, %v1329, %v1333
      %v1336 = vshrl.u32 %v1111, 16
      %v1338 = vrot.slane %v1336, 4
      %v1339 = vshll.u32 %v1111, 16
      %v1341 = vrot.slane %v1339, 5
      %v1342 = vor.u32 %v1338, %v1341
      %v1343 = vrot.slane %v1342, 4
      %v1345 = vshll.u32 %v1112, 16
      %v1347 = vrot.slane %v1345, 5
      %v1348 = vsel %vm222, %v1343, %v1347
      %v1349 = vshrl.u32 %v1112, 16
      %v1351 = vrot.slane %v1349, 4
      %v1352 = vor.u32 %v1351, %v1347
      %v1353 = vrot.slane %v1352, 4
      %v1355 = vshll.u32 %v1135, 16
      %v1357 = vrot.slane %v1355, 5
      %v1358 = vsel %vm222, %v1353, %v1357
      %v1360 = vshrl.u32 %v1113, 16
      %v1362 = vrot.slane %v1360, 4
      %v1363 = vshll.u32 %v1113, 16
      %v1365 = vrot.slane %v1363, 5
      %v1366 = vor.u32 %v1362, %v1365
      %v1367 = vrot.slane %v1366, 4
      %v1369 = vshll.u32 %v1114, 16
      %v1371 = vrot.slane %v1369, 5
      %v1372 = vsel %vm222, %v1367, %v1371
      %v1373 = vshrl.u32 %v1114, 16
      %v1375 = vrot.slane %v1373, 4
      %v1376 = vor.u32 %v1375, %v1371
      %v1377 = vrot.slane %v1376, 4
      %v1379 = vshll.u32 %v1136, 16
      %v1381 = vrot.slane %v1379, 5
      %v1382 = vsel %vm222, %v1377, %v1381
      %v1384 = vshrl.u32 %v1115, 16
      %v1386 = vrot.slane %v1384, 4
      %v1387 = vshll.u32 %v1115, 16
      %v1389 = vrot.slane %v1387, 5
      %v1390 = vor.u32 %v1386, %v1389
      %v1391 = vrot.slane %v1390, 4
      %v1393 = vshll.u32 %v1116, 16
      %v1395 = vrot.slane %v1393, 5
      %v1396 = vsel %vm222, %v1391, %v1395
      %v1397 = vshrl.u32 %v1116, 16
      %v1399 = vrot.slane %v1397, 4
      %v1400 = vor.u32 %v1399, %v1395
      %v1401 = vrot.slane %v1400, 4
      %v1403 = vshll.u32 %v1137, 16
      %v1405 = vrot.slane %v1403, 5
      %v1406 = vsel %vm222, %v1401, %v1405
      %v1408 = vshrl.u32 %v1117, 16
      %v1410 = vrot.slane %v1408, 4
      %v1411 = vshll.u32 %v1117, 16
      %v1413 = vrot.slane %v1411, 5
      %v1414 = vor.u32 %v1410, %v1413
      %v1415 = vrot.slane %v1414, 4
      %v1417 = vshll.u32 %v1118, 16
      %v1419 = vrot.slane %v1417, 5
      %v1420 = vsel %vm222, %v1415, %v1419
      %v1421 = vshrl.u32 %v1118, 16
      %v1423 = vrot.slane %v1421, 4
      %v1424 = vor.u32 %v1423, %v1419
      %v1425 = vrot.slane %v1424, 4
      %v1427 = vshll.u32 %v1138, 16
      %v1429 = vrot.slane %v1427, 5
      %v1430 = vsel %vm222, %v1425, %v1429
      %v1432 = vshrl.u32 %v1119, 16
      %v1434 = vrot.slane %v1432, 4
      %v1435 = vshll.u32 %v1119, 16
      %v1437 = vrot.slane %v1435, 5
      %v1438 = vor.u32 %v1434, %v1437
      %v1439 = vrot.slane %v1438, 4
      %v1441 = vshll.u32 %v1120, 16
      %v1443 = vrot.slane %v1441, 5
      %v1444 = vsel %vm222, %v1439, %v1443
      %v1445 = vshrl.u32 %v1120, 16
      %v1447 = vrot.slane %v1445, 4
      %v1448 = vor.u32 %v1447, %v1443
      %v1449 = vrot.slane %v1448, 4
      %v1451 = vshll.u32 %v1139, 16
      %v1453 = vrot.slane %v1451, 5
      %v1454 = vsel %vm222, %v1449, %v1453
      %v1456 = vshrl.u32 %v1121, 16
      %v1458 = vrot.slane %v1456, 4
      %v1459 = vshll.u32 %v1121, 16
      %v1461 = vrot.slane %v1459, 5
      %v1462 = vor.u32 %v1458, %v1461
      %v1463 = vrot.slane %v1462, 4
      %v1465 = vshll.u32 %v1122, 16
      %v1467 = vrot.slane %v1465, 5
      %v1468 = vsel %vm222, %v1463, %v1467
      %v1469 = vshrl.u32 %v1122, 16
      %v1471 = vrot.slane %v1469, 4
      %v1472 = vor.u32 %v1471, %v1467
      %v1473 = vrot.slane %v1472, 4
      %v1475 = vshll.u32 %v1140, 16
      %v1477 = vrot.slane %v1475, 5
      %v1478 = vsel %vm222, %v1473, %v1477
      %v1480 = vshrl.u32 %v1123, 16
      %v1482 = vrot.slane %v1480, 4
      %v1483 = vshll.u32 %v1123, 16
      %v1485 = vrot.slane %v1483, 5
      %v1486 = vor.u32 %v1482, %v1485
      %v1487 = vrot.slane %v1486, 4
      %v1489 = vshll.u32 %v1124, 16
      %v1491 = vrot.slane %v1489, 5
      %v1492 = vsel %vm222, %v1487, %v1491
      %v1493 = vshrl.u32 %v1124, 16
      %v1495 = vrot.slane %v1493, 4
      %v1496 = vor.u32 %v1495, %v1491
      %v1497 = vrot.slane %v1496, 4
      %v1499 = vshll.u32 %v1141, 16
      %v1501 = vrot.slane %v1499, 5
      %v1502 = vsel %vm222, %v1497, %v1501
      %v1504 = vshrl.u32 %v1125, 16
      %v1506 = vrot.slane %v1504, 4
      %v1507 = vshll.u32 %v1125, 16
      %v1509 = vrot.slane %v1507, 5
      %v1510 = vor.u32 %v1506, %v1509
      %v1511 = vrot.slane %v1510, 4
      %v1513 = vshll.u32 %v1126, 16
      %v1515 = vrot.slane %v1513, 5
      %v1516 = vsel %vm222, %v1511, %v1515
      %v1517 = vshrl.u32 %v1126, 16
      %v1519 = vrot.slane %v1517, 4
      %v1520 = vor.u32 %v1519, %v1515
      %v1521 = vrot.slane %v1520, 4
      %v1523 = vshll.u32 %v1142, 16
      %v1525 = vrot.slane %v1523, 5
      %v1526 = vsel %vm222, %v1521, %v1525
      %v1527 = vld [vmem:[%s1094] sm:$0xe]
      %v1528 = vld [vmem:[%s1094 + $0xc] sm:$0xe]
      %v1529 = vld [vmem:[%s1094 + $0x18] sm:$0xe]
      %v1530 = vld [vmem:[%s1094 + $0x24] sm:$0xe]
      %v1531 = vld [vmem:[%s1094 + $0x30] sm:$0xe]
      %v1532 = vld [vmem:[%s1094 + $0x3c] sm:$0xe]
      %v1533 = vld [vmem:[%s1094 + $0x48] sm:$0xe]
      %v1534 = vld [vmem:[%s1094 + $0x54] sm:$0xe]
      %v1535 = vld [vmem:[%s1094 + $0x60] sm:$0xe]
      %v1536 = vld [vmem:[%s1094 + $0x6c] sm:$0xe]
      %v1537 = vld [vmem:[%s1094 + $0x78] sm:$0xe]
      %v1538 = vld [vmem:[%s1094 + $0x84] sm:$0xe]
      %v1539 = vld [vmem:[%s1094 + $0x90] sm:$0xe]
      %v1540 = vld [vmem:[%s1094 + $0x9c] sm:$0xe]
      %v1541 = vld [vmem:[%s1094 + $0xa8] sm:$0xe]
      %v1542 = vld [vmem:[%s1094 + $0xb4] sm:$0xe]
      %v1591 = vrot.slane %v1527, 5
      %v1592 = vrot.slane %v1591, 4
      %v1593 = vrot.slane %v1096, 5
      %v1594 = vsel %vm673, %v1592, %v1593
      %v1595 = vrot.slane %v1593, 4
      %v1596 = vrot.slane %v1127, 5
      %v1597 = vsel %vm673, %v1595, %v1596
      %v1598 = vrot.slane %v1528, 5
      %v1599 = vrot.slane %v1598, 4
      %v1600 = vrot.slane %v1098, 5
      %v1601 = vsel %vm673, %v1599, %v1600
      %v1602 = vrot.slane %v1600, 4
      %v1603 = vrot.slane %v1128, 5
      %v1604 = vsel %vm673, %v1602, %v1603
      %v1605 = vrot.slane %v1529, 5
      %v1606 = vrot.slane %v1605, 4
      %v1607 = vrot.slane %v1100, 5
      %v1608 = vsel %vm673, %v1606, %v1607
      %v1609 = vrot.slane %v1607, 4
      %v1610 = vrot.slane %v1129, 5
      %v1611 = vsel %vm673, %v1609, %v1610
      %v1612 = vrot.slane %v1530, 5
      %v1613 = vrot.slane %v1612, 4
      %v1614 = vrot.slane %v1102, 5
      %v1615 = vsel %vm673, %v1613, %v1614
      %v1616 = vrot.slane %v1614, 4
      %v1617 = vrot.slane %v1130, 5
      %v1618 = vsel %vm673, %v1616, %v1617
      %v1619 = vrot.slane %v1531, 5
      %v1620 = vrot.slane %v1619, 4
      %v1621 = vrot.slane %v1104, 5
      %v1622 = vsel %vm673, %v1620, %v1621
      %v1623 = vrot.slane %v1621, 4
      %v1624 = vrot.slane %v1131, 5
      %v1625 = vsel %vm673, %v1623, %v1624
      %v1626 = vrot.slane %v1532, 5
      %v1627 = vrot.slane %v1626, 4
      %v1628 = vrot.slane %v1106, 5
      %v1629 = vsel %vm673, %v1627, %v1628
      %v1630 = vrot.slane %v1628, 4
      %v1631 = vrot.slane %v1132, 5
      %v1632 = vsel %vm673, %v1630, %v1631
      %v1633 = vrot.slane %v1533, 5
      %v1634 = vrot.slane %v1633, 4
      %v1635 = vrot.slane %v1108, 5
      %v1636 = vsel %vm673, %v1634, %v1635
      %v1637 = vrot.slane %v1635, 4
      %v1638 = vrot.slane %v1133, 5
      %v1639 = vsel %vm673, %v1637, %v1638
      %v1640 = vrot.slane %v1534, 5
      %v1641 = vrot.slane %v1640, 4
      %v1642 = vrot.slane %v1110, 5
      %v1643 = vsel %vm673, %v1641, %v1642
      %v1644 = vrot.slane %v1642, 4
      %v1645 = vrot.slane %v1134, 5
      %v1646 = vsel %vm673, %v1644, %v1645
      %v1647 = vrot.slane %v1535, 5
      %v1648 = vrot.slane %v1647, 4
      %v1649 = vrot.slane %v1112, 5
      %v1650 = vsel %vm673, %v1648, %v1649
      %v1651 = vrot.slane %v1649, 4
      %v1652 = vrot.slane %v1135, 5
      %v1653 = vsel %vm673, %v1651, %v1652
      %v1654 = vrot.slane %v1536, 5
      %v1655 = vrot.slane %v1654, 4
      %v1656 = vrot.slane %v1114, 5
      %v1657 = vsel %vm673, %v1655, %v1656
      %v1658 = vrot.slane %v1656, 4
      %v1659 = vrot.slane %v1136, 5
      %v1660 = vsel %vm673, %v1658, %v1659
      %v1661 = vrot.slane %v1537, 5
      %v1662 = vrot.slane %v1661, 4
      %v1663 = vrot.slane %v1116, 5
      %v1664 = vsel %vm673, %v1662, %v1663
      %v1665 = vrot.slane %v1663, 4
      %v1666 = vrot.slane %v1137, 5
      %v1667 = vsel %vm673, %v1665, %v1666
      %v1668 = vrot.slane %v1538, 5
      %v1669 = vrot.slane %v1668, 4
      %v1670 = vrot.slane %v1118, 5
      %v1671 = vsel %vm673, %v1669, %v1670
      %v1672 = vrot.slane %v1670, 4
      %v1673 = vrot.slane %v1138, 5
      %v1674 = vsel %vm673, %v1672, %v1673
      %v1675 = vrot.slane %v1539, 5
      %v1676 = vrot.slane %v1675, 4
      %v1677 = vrot.slane %v1120, 5
      %v1678 = vsel %vm673, %v1676, %v1677
      %v1679 = vrot.slane %v1677, 4
      %v1680 = vrot.slane %v1139, 5
      %v1681 = vsel %vm673, %v1679, %v1680
      %v1682 = vrot.slane %v1540, 5
      %v1683 = vrot.slane %v1682, 4
      %v1684 = vrot.slane %v1122, 5
      %v1685 = vsel %vm673, %v1683, %v1684
      %v1686 = vrot.slane %v1684, 4
      %v1687 = vrot.slane %v1140, 5
      %v1688 = vsel %vm673, %v1686, %v1687
      %v1689 = vrot.slane %v1541, 5
      %v1690 = vrot.slane %v1689, 4
      %v1691 = vrot.slane %v1124, 5
      %v1692 = vsel %vm673, %v1690, %v1691
      %v1693 = vrot.slane %v1691, 4
      %v1694 = vrot.slane %v1141, 5
      %v1695 = vsel %vm673, %v1693, %v1694
      %v1696 = vrot.slane %v1542, 5
      %v1697 = vrot.slane %v1696, 4
      %v1698 = vrot.slane %v1126, 5
      %v1699 = vsel %vm673, %v1697, %v1698
      %v1700 = vrot.slane %v1698, 4
      %v1701 = vrot.slane %v1142, 5
      %v1702 = vsel %vm673, %v1700, %v1701
      %v1719 = vunpack.c.l.b16 %v1095
      %v1720 = vunpack.c.l.b16 %v1096
      %v1721 = vunpack.c.l.b16 %v1097
      %v1722 = vunpack.c.l.b16 %v1098
      %v1723 = vunpack.c.l.b16 %v1099
      %v1724 = vunpack.c.l.b16 %v1100
      %v1725 = vunpack.c.l.b16 %v1101
      %v1726 = vunpack.c.l.b16 %v1102
      %v1727 = vunpack.c.l.b16 %v1103
      %v1728 = vunpack.c.l.b16 %v1104
      %v1729 = vunpack.c.l.b16 %v1105
      %v1730 = vunpack.c.l.b16 %v1106
      %v1731 = vunpack.c.l.b16 %v1107
      %v1732 = vunpack.c.l.b16 %v1108
      %v1733 = vunpack.c.l.b16 %v1109
      %v1734 = vunpack.c.l.b16 %v1110
      %v1735 = vunpack.c.l.b16 %v1111
      %v1736 = vunpack.c.l.b16 %v1112
      %v1737 = vunpack.c.l.b16 %v1113
      %v1738 = vunpack.c.l.b16 %v1114
      %v1739 = vunpack.c.l.b16 %v1115
      %v1740 = vunpack.c.l.b16 %v1116
      %v1741 = vunpack.c.l.b16 %v1117
      %v1742 = vunpack.c.l.b16 %v1118
      %v1743 = vunpack.c.l.b16 %v1119
      %v1744 = vunpack.c.l.b16 %v1120
      %v1745 = vunpack.c.l.b16 %v1121
      %v1746 = vunpack.c.l.b16 %v1122
      %v1747 = vunpack.c.l.b16 %v1123
      %v1748 = vunpack.c.l.b16 %v1124
      %v1749 = vunpack.c.l.b16 %v1125
      %v1750 = vunpack.c.l.b16 %v1126
      %v1751 = vpack.c.b16 %v1720, %v1719
      %v1752 = vpack.c.b16 %v1722, %v1721
      %v1753 = vpack.c.b16 %v1724, %v1723
      %v1754 = vpack.c.b16 %v1726, %v1725
      %v1755 = vpack.c.b16 %v1728, %v1727
      %v1756 = vpack.c.b16 %v1730, %v1729
      %v1757 = vpack.c.b16 %v1732, %v1731
      %v1758 = vpack.c.b16 %v1734, %v1733
      %v1759 = vpack.c.b16 %v1736, %v1735
      %v1760 = vpack.c.b16 %v1738, %v1737
      %v1761 = vpack.c.b16 %v1740, %v1739
      %v1762 = vpack.c.b16 %v1742, %v1741
      %v1763 = vpack.c.b16 %v1744, %v1743
      %v1764 = vpack.c.b16 %v1746, %v1745
      %v1765 = vpack.c.b16 %v1748, %v1747
      %v1766 = vpack.c.b16 %v1750, %v1749
      %v1767 = vunpack.c.l.b16 %v1156
      %v1768 = vunpack.c.l.b16 %v1166
      %v1769 = vunpack.c.l.b16 %v1180
      %v1770 = vunpack.c.l.b16 %v1190
      %v1771 = vunpack.c.l.b16 %v1204
      %v1772 = vunpack.c.l.b16 %v1214
      %v1773 = vunpack.c.l.b16 %v1228
      %v1774 = vunpack.c.l.b16 %v1238
      %v1775 = vunpack.c.l.b16 %v1252
      %v1776 = vunpack.c.l.b16 %v1262
      %v1777 = vunpack.c.l.b16 %v1276
      %v1778 = vunpack.c.l.b16 %v1286
      %v1779 = vunpack.c.l.b16 %v1300
      %v1780 = vunpack.c.l.b16 %v1310
      %v1781 = vunpack.c.l.b16 %v1324
      %v1782 = vunpack.c.l.b16 %v1334
      %v1783 = vunpack.c.l.b16 %v1348
      %v1784 = vunpack.c.l.b16 %v1358
      %v1785 = vunpack.c.l.b16 %v1372
      %v1786 = vunpack.c.l.b16 %v1382
      %v1787 = vunpack.c.l.b16 %v1396
      %v1788 = vunpack.c.l.b16 %v1406
      %v1789 = vunpack.c.l.b16 %v1420
      %v1790 = vunpack.c.l.b16 %v1430
      %v1791 = vunpack.c.l.b16 %v1444
      %v1792 = vunpack.c.l.b16 %v1454
      %v1793 = vunpack.c.l.b16 %v1468
      %v1794 = vunpack.c.l.b16 %v1478
      %v1795 = vunpack.c.l.b16 %v1492
      %v1796 = vunpack.c.l.b16 %v1502
      %v1797 = vunpack.c.l.b16 %v1516
      %v1798 = vunpack.c.l.b16 %v1526
      %v1799 = vpack.c.b16 %v1768, %v1767
      %v1800 = vpack.c.b16 %v1770, %v1769
      %v1801 = vpack.c.b16 %v1772, %v1771
      %v1802 = vpack.c.b16 %v1774, %v1773
      %v1803 = vpack.c.b16 %v1776, %v1775
      %v1804 = vpack.c.b16 %v1778, %v1777
      %v1805 = vpack.c.b16 %v1780, %v1779
      %v1806 = vpack.c.b16 %v1782, %v1781
      %v1807 = vpack.c.b16 %v1784, %v1783
      %v1808 = vpack.c.b16 %v1786, %v1785
      %v1809 = vpack.c.b16 %v1788, %v1787
      %v1810 = vpack.c.b16 %v1790, %v1789
      %v1811 = vpack.c.b16 %v1792, %v1791
      %v1812 = vpack.c.b16 %v1794, %v1793
      %v1813 = vpack.c.b16 %v1796, %v1795
      %v1814 = vpack.c.b16 %v1798, %v1797
      %1815 = vrot.lane.b32.xlu0 %v1799, 4
      %v1816 = vpop.permute.xlu0 %1815
      %1817 = vrot.lane.b32.xlu0 %v1800, 4
      %v1818 = vpop.permute.xlu0 %1817
      %1819 = vrot.lane.b32.xlu0 %v1801, 4
      %v1820 = vpop.permute.xlu0 %1819
      %1821 = vrot.lane.b32.xlu0 %v1802, 4
      %v1822 = vpop.permute.xlu0 %1821
      %1823 = vrot.lane.b32.xlu0 %v1803, 4
      %v1824 = vpop.permute.xlu0 %1823
      %1825 = vrot.lane.b32.xlu0 %v1804, 4
      %v1826 = vpop.permute.xlu0 %1825
      %1827 = vrot.lane.b32.xlu0 %v1805, 4
      %v1828 = vpop.permute.xlu0 %1827
      %1829 = vrot.lane.b32.xlu0 %v1806, 4
      %v1830 = vpop.permute.xlu0 %1829
      %1831 = vrot.lane.b32.xlu0 %v1807, 4
      %v1832 = vpop.permute.xlu0 %1831
      %1833 = vrot.lane.b32.xlu0 %v1808, 4
      %v1834 = vpop.permute.xlu0 %1833
      %1835 = vrot.lane.b32.xlu0 %v1809, 4
      %v1836 = vpop.permute.xlu0 %1835
      %1837 = vrot.lane.b32.xlu0 %v1810, 4
      %v1838 = vpop.permute.xlu0 %1837
      %1839 = vrot.lane.b32.xlu0 %v1811, 4
      %v1840 = vpop.permute.xlu0 %1839
      %1841 = vrot.lane.b32.xlu0 %v1812, 4
      %v1842 = vpop.permute.xlu0 %1841
      %1843 = vrot.lane.b32.xlu0 %v1813, 4
      %v1844 = vpop.permute.xlu0 %1843
      %1845 = vrot.lane.b32.xlu0 %v1814, 4
      %v1846 = vpop.permute.xlu0 %1845
      %v1847 = vunpack.c.l.b16 %v1594
      %v1848 = vunpack.c.l.b16 %v1597
      %v1849 = vunpack.c.l.b16 %v1601
      %v1850 = vunpack.c.l.b16 %v1604
      %v1851 = vunpack.c.l.b16 %v1608
      %v1852 = vunpack.c.l.b16 %v1611
      %v1853 = vunpack.c.l.b16 %v1615
      %v1854 = vunpack.c.l.b16 %v1618
      %v1855 = vunpack.c.l.b16 %v1622
      %v1856 = vunpack.c.l.b16 %v1625
      %v1857 = vunpack.c.l.b16 %v1629
      %v1858 = vunpack.c.l.b16 %v1632
      %v1859 = vunpack.c.l.b16 %v1636
      %v1860 = vunpack.c.l.b16 %v1639
      %v1861 = vunpack.c.l.b16 %v1643
      %v1862 = vunpack.c.l.b16 %v1646
      %v1863 = vunpack.c.l.b16 %v1650
      %v1864 = vunpack.c.l.b16 %v1653
      %v1865 = vunpack.c.l.b16 %v1657
      %v1866 = vunpack.c.l.b16 %v1660
      %v1867 = vunpack.c.l.b16 %v1664
      %v1868 = vunpack.c.l.b16 %v1667
      %v1869 = vunpack.c.l.b16 %v1671
      %v1870 = vunpack.c.l.b16 %v1674
      %v1871 = vunpack.c.l.b16 %v1678
      %v1872 = vunpack.c.l.b16 %v1681
      %v1873 = vunpack.c.l.b16 %v1685
      %v1874 = vunpack.c.l.b16 %v1688
      %v1875 = vunpack.c.l.b16 %v1692
      %v1876 = vunpack.c.l.b16 %v1695
      %v1877 = vunpack.c.l.b16 %v1699
      %v1878 = vunpack.c.l.b16 %v1702
      %v1879 = vpack.c.b16 %v1848, %v1847
      %v1880 = vpack.c.b16 %v1850, %v1849
      %v1881 = vpack.c.b16 %v1852, %v1851
      %v1882 = vpack.c.b16 %v1854, %v1853
      %v1883 = vpack.c.b16 %v1856, %v1855
      %v1884 = vpack.c.b16 %v1858, %v1857
      %v1885 = vpack.c.b16 %v1860, %v1859
      %v1886 = vpack.c.b16 %v1862, %v1861
      %v1887 = vpack.c.b16 %v1864, %v1863
      %v1888 = vpack.c.b16 %v1866, %v1865
      %v1889 = vpack.c.b16 %v1868, %v1867
      %v1890 = vpack.c.b16 %v1870, %v1869
      %v1891 = vpack.c.b16 %v1872, %v1871
      %v1892 = vpack.c.b16 %v1874, %v1873
      %v1893 = vpack.c.b16 %v1876, %v1875
      %v1894 = vpack.c.b16 %v1878, %v1877
      %1895 = vrot.lane.b32.xlu0 %v1879, 8
      %v1896 = vpop.permute.xlu0 %1895
      %1897 = vrot.lane.b32.xlu0 %v1880, 8
      %v1898 = vpop.permute.xlu0 %1897
      %1899 = vrot.lane.b32.xlu0 %v1881, 8
      %v1900 = vpop.permute.xlu0 %1899
      %1901 = vrot.lane.b32.xlu0 %v1882, 8
      %v1902 = vpop.permute.xlu0 %1901
      %1903 = vrot.lane.b32.xlu0 %v1883, 8
      %v1904 = vpop.permute.xlu0 %1903
      %1905 = vrot.lane.b32.xlu0 %v1884, 8
      %v1906 = vpop.permute.xlu0 %1905
      %1907 = vrot.lane.b32.xlu0 %v1885, 8
      %v1908 = vpop.permute.xlu0 %1907
      %1909 = vrot.lane.b32.xlu0 %v1886, 8
      %v1910 = vpop.permute.xlu0 %1909
      %1911 = vrot.lane.b32.xlu0 %v1887, 8
      %v1912 = vpop.permute.xlu0 %1911
      %1913 = vrot.lane.b32.xlu0 %v1888, 8
      %v1914 = vpop.permute.xlu0 %1913
      %1915 = vrot.lane.b32.xlu0 %v1889, 8
      %v1916 = vpop.permute.xlu0 %1915
      %1917 = vrot.lane.b32.xlu0 %v1890, 8
      %v1918 = vpop.permute.xlu0 %1917
      %1919 = vrot.lane.b32.xlu0 %v1891, 8
      %v1920 = vpop.permute.xlu0 %1919
      %1921 = vrot.lane.b32.xlu0 %v1892, 8
      %v1922 = vpop.permute.xlu0 %1921
      %1923 = vrot.lane.b32.xlu0 %v1893, 8
      %v1924 = vpop.permute.xlu0 %1923
      %1925 = vrot.lane.b32.xlu0 %v1894, 8
      %v1926 = vpop.permute.xlu0 %1925
      %v1929 = vsel %vm1010, %v1751, %v1816
      %v1932 = vsel %vm1010, %v1752, %v1818
      %v1935 = vsel %vm1010, %v1753, %v1820
      %v1938 = vsel %vm1010, %v1754, %v1822
      %v1941 = vsel %vm1010, %v1755, %v1824
      %v1944 = vsel %vm1010, %v1756, %v1826
      %v1947 = vsel %vm1010, %v1757, %v1828
      %v1950 = vsel %vm1010, %v1758, %v1830
      %v1953 = vsel %vm1010, %v1759, %v1832
      %v1956 = vsel %vm1010, %v1760, %v1834
      %v1959 = vsel %vm1010, %v1761, %v1836
      %v1962 = vsel %vm1010, %v1762, %v1838
      %v1965 = vsel %vm1010, %v1763, %v1840
      %v1968 = vsel %vm1010, %v1764, %v1842
      %v1971 = vsel %vm1010, %v1765, %v1844
      %v1974 = vsel %vm1010, %v1766, %v1846
      %v1976 = vsel %vm1059, %v1929, %v1896
      %v1978 = vsel %vm1059, %v1932, %v1898
      %v1980 = vsel %vm1059, %v1935, %v1900
      %v1982 = vsel %vm1059, %v1938, %v1902
      %v1984 = vsel %vm1059, %v1941, %v1904
      %v1986 = vsel %vm1059, %v1944, %v1906
      %v1988 = vsel %vm1059, %v1947, %v1908
      %v1990 = vsel %vm1059, %v1950, %v1910
      %v1992 = vsel %vm1059, %v1953, %v1912
      %v1994 = vsel %vm1059, %v1956, %v1914
      %v1996 = vsel %vm1059, %v1959, %v1916
      %v1998 = vsel %vm1059, %v1962, %v1918
      %v2000 = vsel %vm1059, %v1965, %v1920
      %v2002 = vsel %vm1059, %v1968, %v1922
      %v2004 = vsel %vm1059, %v1971, %v1924
      %v2006 = vsel %vm1059, %v1974, %v1926
      %s2007 = scalar_lea.vmem %s1, 8
      %v2008 = vld [vmem:[%s2007] sm:$0xf]
      %v2009 = vld [vmem:[%s2007 + $0x4] sm:$0x3]
      %v2012 = vunpack.c.l.b16 %v2008
      %v2013 = vunpack.c.l.b16 %v2009
      %v2014 = vpack.c.b16 %v2013, %v2012
      %vm2015 = vcmask 97280
      %v2016 = vsel %vm2015, %v1976, 0
      %v2018 = vsel %vm2015, %v1978, 0
      %v2020 = vsel %vm2015, %v1980, 0
      %v2022 = vsel %vm2015, %v1982, 0
      %v2024 = vsel %vm2015, %v1984, 0
      %v2026 = vsel %vm2015, %v1986, 0
      %v2028 = vsel %vm2015, %v1988, 0
      %v2030 = vsel %vm2015, %v1990, 0
      %v2032 = vsel %vm2015, %v1992, 0
      %v2034 = vsel %vm2015, %v1994, 0
      %v2036 = vsel %vm2015, %v1996, 0
      %v2038 = vsel %vm2015, %v1998, 0
      %v2040 = vsel %vm2015, %v2000, 0
      %v2042 = vsel %vm2015, %v2002, 0
      %v2044 = vsel %vm2015, %v2004, 0
      %v2046 = vsel %vm2015, %v2006, 0
      %vm2048 = vcmask 1045504
      %v2050 = vsel %vm2048, %v2014, 0
      %2052 = vmatprep.subr.bf16.mxu0 0
      %2053 = vmatpush1.bf16.msra.mxu0 %v2050
      %2054 = vmatprep.subr.bf16.mxu0 0
      %2055 = vmatpush1.bf16.msra.mxu0 0
      %2056 = vmatprep.subr.bf16.mxu0 0
      %2057 = vmatpush1.bf16.msra.mxu0 0
      %2058 = vmatprep.subr.bf16.mxu0 0
      %2059 = vmatpush1.bf16.msra.mxu0 0
      %2060 = vmatprep.subr.bf16.mxu0 0
      %2061 = vmatpush1.bf16.msra.mxu0 0
      %2062 = vmatprep.subr.bf16.mxu0 0
      %2063 = vmatpush1.bf16.msra.mxu0 0
      %2064 = vmatprep.subr.bf16.mxu0 0
      %2065 = vmatpush1.bf16.msra.mxu0 0
      %2066 = vmatprep.subr.bf16.mxu0 0
      %2067 = vmatpush1.bf16.msra.mxu0 0
      %2068 = vmatprep.subr.bf16.mxu0 0
      %2069 = vmatpush1.bf16.msra.mxu0 0
      %2070 = vmatprep.subr.bf16.mxu0 0
      %2071 = vmatpush1.bf16.msra.mxu0 0
      %2072 = vmatprep.subr.bf16.mxu0 0
      %2073 = vmatpush1.bf16.msra.mxu0 0
      %2074 = vmatprep.subr.bf16.mxu0 0
      %2075 = vmatpush1.bf16.msra.mxu0 0
      %2076 = vmatprep.subr.bf16.mxu0 0
      %2077 = vmatpush1.bf16.msra.mxu0 0
      %2078 = vmatprep.subr.bf16.mxu0 0
      %2079 = vmatpush1.bf16.msra.mxu0 0
      %2080 = vmatprep.subr.bf16.mxu0 0
      %2081 = vmatpush1.bf16.msra.mxu0 0
      %2082 = vmatprep.subr.bf16.mxu0 0
      %2083 = vmatpush1.bf16.msra.mxu0 0
      %2084 = vmatprep.mubr.bf16.mxu0 0
      %2085 = vmatmul.mubr.bf16.gmra.mrb[0].mxu0 %v2016
      %v2086 = vpop.f32.mrb[0].mxu0
      %v2087 = vadd.f32 0.0, %v2086
      %v2088 = vpop.f32.mrb[0].mxu0
      %v2089 = vpop.f32.mrb[0].mxu0
      %v2090 = vadd.f32 0.0, %v2089
      %v2091 = vpop.f32.mrb[0].mxu0
      %2092 = vmatprep.mubr.bf16.mxu0 0
      %2093 = vmatmul.mubr.bf16.gmra.mrb[0].mxu0 %v2018
      %v2094 = vpop.f32.mrb[0].mxu0
      %v2095 = vadd.f32 0.0, %v2094
      %v2096 = vpop.f32.mrb[0].mxu0
      %v2097 = vpop.f32.mrb[0].mxu0
      %v2098 = vadd.f32 0.0, %v2097
      %v2099 = vpop.f32.mrb[0].mxu0
      %2100 = vmatprep.mubr.bf16.mxu0 0
      %2101 = vmatmul.mubr.bf16.gmra.mrb[0].mxu0 %v2020
      %v2102 = vpop.f32.mrb[0].mxu0
      %v2103 = vadd.f32 0.0, %v2102
      %v2104 = vpop.f32.mrb[0].mxu0
      %v2105 = vpop.f32.mrb[0].mxu0
      %v2106 = vadd.f32 0.0, %v2105
      %v2107 = vpop.f32.mrb[0].mxu0
      %2108 = vmatprep.mubr.bf16.mxu0 0
      %2109 = vmatmul.mubr.bf16.gmra.mrb[0].mxu0 %v2022
      %v2110 = vpop.f32.mrb[0].mxu0
      %v2111 = vadd.f32 0.0, %v2110
      %v2112 = vpop.f32.mrb[0].mxu0
      %v2113 = vpop.f32.mrb[0].mxu0
      %v2114 = vadd.f32 0.0, %v2113
      %v2115 = vpop.f32.mrb[0].mxu0
      %2116 = vmatprep.mubr.bf16.mxu0 0
      %2117 = vmatmul.mubr.bf16.gmra.mrb[0].mxu0 %v2024
      %v2118 = vpop.f32.mrb[0].mxu0
      %v2119 = vadd.f32 0.0, %v2118
      %v2120 = vpop.f32.mrb[0].mxu0
      %v2121 = vpop.f32.mrb[0].mxu0
      %v2122 = vadd.f32 0.0, %v2121
      %v2123 = vpop.f32.mrb[0].mxu0
      %2124 = vmatprep.mubr.bf16.mxu0 0
      %2125 = vmatmul.mubr.bf16.gmra.mrb[0].mxu0 %v2026
      %v2126 = vpop.f32.mrb[0].mxu0
      %v2127 = vadd.f32 0.0, %v2126
      %v2128 = vpop.f32.mrb[0].mxu0
      %v2129 = vpop.f32.mrb[0].mxu0
      %v2130 = vadd.f32 0.0, %v2129
      %v2131 = vpop.f32.mrb[0].mxu0
      %2132 = vmatprep.mubr.bf16.mxu0 0
      %2133 = vmatmul.mubr.bf16.gmra.mrb[0].mxu0 %v2028
      %v2134 = vpop.f32.mrb[0].mxu0
      %v2135 = vadd.f32 0.0, %v2134
      %v2136 = vpop.f32.mrb[0].mxu0
      %v2137 = vpop.f32.mrb[0].mxu0
      %v2138 = vadd.f32 0.0, %v2137
      %v2139 = vpop.f32.mrb[0].mxu0
      %2140 = vmatprep.mubr.bf16.mxu0 0
      %2141 = vmatmul.mubr.bf16.gmra.mrb[0].mxu0 %v2030
      %v2142 = vpop.f32.mrb[0].mxu0
      %v2143 = vadd.f32 0.0, %v2142
      %v2144 = vpop.f32.mrb[0].mxu0
      %v2145 = vpop.f32.mrb[0].mxu0
      %v2146 = vadd.f32 0.0, %v2145
      %v2147 = vpop.f32.mrb[0].mxu0
      %2148 = vmatprep.mubr.bf16.mxu0 0
      %2149 = vmatmul.mubr.bf16.gmra.mrb[0].mxu0 %v2032
      %v2150 = vpop.f32.mrb[0].mxu0
      %v2151 = vadd.f32 0.0, %v2150
      %v2152 = vpop.f32.mrb[0].mxu0
      %v2153 = vpop.f32.mrb[0].mxu0
      %v2154 = vadd.f32 0.0, %v2153
      %v2155 = vpop.f32.mrb[0].mxu0
      %2156 = vmatprep.mubr.bf16.mxu0 0
      %2157 = vmatmul.mubr.bf16.gmra.mrb[0].mxu0 %v2034
      %v2158 = vpop.f32.mrb[0].mxu0
      %v2159 = vadd.f32 0.0, %v2158
      %v2160 = vpop.f32.mrb[0].mxu0
      %v2161 = vpop.f32.mrb[0].mxu0
      %v2162 = vadd.f32 0.0, %v2161
      %v2163 = vpop.f32.mrb[0].mxu0
      %2164 = vmatprep.mubr.bf16.mxu0 0
      %2165 = vmatmul.mubr.bf16.gmra.mrb[0].mxu0 %v2036
      %v2166 = vpop.f32.mrb[0].mxu0
      %v2167 = vadd.f32 0.0, %v2166
      %v2168 = vpop.f32.mrb[0].mxu0
      %v2169 = vpop.f32.mrb[0].mxu0
      %v2170 = vadd.f32 0.0, %v2169
      %v2171 = vpop.f32.mrb[0].mxu0
      %2172 = vmatprep.mubr.bf16.mxu0 0
      %2173 = vmatmul.mubr.bf16.gmra.mrb[0].mxu0 %v2038
      %v2174 = vpop.f32.mrb[0].mxu0
      %v2175 = vadd.f32 0.0, %v2174
      %v2176 = vpop.f32.mrb[0].mxu0
      %v2177 = vpop.f32.mrb[0].mxu0
      %v2178 = vadd.f32 0.0, %v2177
      %v2179 = vpop.f32.mrb[0].mxu0
      %2180 = vmatprep.mubr.bf16.mxu0 0
      %2181 = vmatmul.mubr.bf16.gmra.mrb[0].mxu0 %v2040
      %v2182 = vpop.f32.mrb[0].mxu0
      %v2183 = vadd.f32 0.0, %v2182
      %v2184 = vpop.f32.mrb[0].mxu0
      %v2185 = vpop.f32.mrb[0].mxu0
      %v2186 = vadd.f32 0.0, %v2185
      %v2187 = vpop.f32.mrb[0].mxu0
      %2188 = vmatprep.mubr.bf16.mxu0 0
      %2189 = vmatmul.mubr.bf16.gmra.mrb[0].mxu0 %v2042
      %v2190 = vpop.f32.mrb[0].mxu0
      %v2191 = vadd.f32 0.0, %v2190
      %v2192 = vpop.f32.mrb[0].mxu0
      %v2193 = vpop.f32.mrb[0].mxu0
      %v2194 = vadd.f32 0.0, %v2193
      %v2195 = vpop.f32.mrb[0].mxu0
      %2196 = vmatprep.mubr.bf16.mxu0 0
      %2197 = vmatmul.mubr.bf16.gmra.mrb[0].mxu0 %v2044
      %v2198 = vpop.f32.mrb[0].mxu0
      %v2199 = vadd.f32 0.0, %v2198
      %v2200 = vpop.f32.mrb[0].mxu0
      %v2201 = vpop.f32.mrb[0].mxu0
      %v2202 = vadd.f32 0.0, %v2201
      %v2203 = vpop.f32.mrb[0].mxu0
      %2204 = vmatprep.mubr.bf16.mxu0 0
      %2205 = vmatmul.mubr.bf16.gmra.mrb[0].mxu0 %v2046
      %v2206 = vpop.f32.mrb[0].mxu0
      %v2207 = vadd.f32 0.0, %v2206
      %v2208 = vpop.f32.mrb[0].mxu0
      %v2209 = vpop.f32.mrb[0].mxu0
      %v2210 = vadd.f32 0.0, %v2209
      %v2211 = vpop.f32.mrb[0].mxu0
      %2212 = vdwg.mxu0
      %v2215 = vunpack.c.l.b16 %v1092
      %v2216 = vunpack.c.l.b16 %v1093
      %v2217 = vpack.c.b16 %v2216, %v2215
      %v2218 = vsel %vm2015, %v1061, 0
      %v2220 = vsel %vm2015, %v1063, 0
      %v2222 = vsel %vm2015, %v1065, 0
      %v2224 = vsel %vm2015, %v1067, 0
      %v2226 = vsel %vm2015, %v1069, 0
      %v2228 = vsel %vm2015, %v1071, 0
      %v2230 = vsel %vm2015, %v1073, 0
      %v2232 = vsel %vm2015, %v1075, 0
      %v2234 = vsel %vm2015, %v1077, 0
      %v2236 = vsel %vm2015, %v1079, 0
      %v2238 = vsel %vm2015, %v1081, 0
      %v2240 = vsel %vm2015, %v1083, 0
      %v2242 = vsel %vm2015, %v1085, 0
      %v2244 = vsel %vm2015, %v1087, 0
      %v2246 = vsel %vm2015, %v1089, 0
      %v2248 = vsel %vm2015, %v1091, 0
      %v2251 = vsel %vm2048, %v2217, 0
      %2253 = vmatprep.subr.bf16.mxu0 0
      %2254 = vmatpush1.bf16.msra.mxu0 %v2251
      %2255 = vmatprep.subr.bf16.mxu0 0
      %2256 = vmatpush1.bf16.msra.mxu0 0
      %2257 = vmatprep.subr.bf16.mxu0 0
      %2258 = vmatpush1.bf16.msra.mxu0 0
      %2259 = vmatprep.subr.bf16.mxu0 0
      %2260 = vmatpush1.bf16.msra.mxu0 0
      %2261 = vmatprep.subr.bf16.mxu0 0
      %2262 = vmatpush1.bf16.msra.mxu0 0
      %2263 = vmatprep.subr.bf16.mxu0 0
      %2264 = vmatpush1.bf16.msra.mxu0 0
      %2265 = vmatprep.subr.bf16.mxu0 0
      %2266 = vmatpush1.bf16.msra.mxu0 0
      %2267 = vmatprep.subr.bf16.mxu0 0
      %2268 = vmatpush1.bf16.msra.mxu0 0
      %2269 = vmatprep.subr.bf16.mxu0 0
      %2270 = vmatpush1.bf16.msra.mxu0 0
      %2271 = vmatprep.subr.bf16.mxu0 0
      %2272 = vmatpush1.bf16.msra.mxu0 0
      %2273 = vmatprep.subr.bf16.mxu0 0
      %2274 = vmatpush1.bf16.msra.mxu0 0
      %2275 = vmatprep.subr.bf16.mxu0 0
      %2276 = vmatpush1.bf16.msra.mxu0 0
      %2277 = vmatprep.subr.bf16.mxu0 0
      %2278 = vmatpush1.bf16.msra.mxu0 0
      %2279 = vmatprep.subr.bf16.mxu0 0
      %2280 = vmatpush1.bf16.msra.mxu0 0
      %2281 = vmatprep.subr.bf16.mxu0 0
      %2282 = vmatpush1.bf16.msra.mxu0 0
      %2283 = vmatprep.subr.bf16.mxu0 0
      %2284 = vmatpush1.bf16.msra.mxu0 0
      %2285 = vmatprep.mubr.bf16.mxu0 0
      %2286 = vmatmul.mubr.bf16.gmra.mrb[0].mxu0 %v2218
      %v2287 = vpop.f32.mrb[0].mxu0
      %v2288 = vadd.f32 %v2087, %v2287
      %v2289 = vpop.f32.mrb[0].mxu0
      %v2290 = vpop.f32.mrb[0].mxu0
      %v2291 = vadd.f32 %v2090, %v2290
      %v2292 = vpop.f32.mrb[0].mxu0
      %2293 = vmatprep.mubr.bf16.mxu0 0
      %2294 = vmatmul.mubr.bf16.gmra.mrb[0].mxu0 %v2220
      %v2295 = vpop.f32.mrb[0].mxu0
      %v2296 = vadd.f32 %v2095, %v2295
      %v2297 = vpop.f32.mrb[0].mxu0
      %v2298 = vpop.f32.mrb[0].mxu0
      %v2299 = vadd.f32 %v2098, %v2298
      %v2300 = vpop.f32.mrb[0].mxu0
      %2301 = vmatprep.mubr.bf16.mxu0 0
      %2302 = vmatmul.mubr.bf16.gmra.mrb[0].mxu0 %v2222
      %v2303 = vpop.f32.mrb[0].mxu0
      %v2304 = vadd.f32 %v2103, %v2303
      %v2305 = vpop.f32.mrb[0].mxu0
      %v2306 = vpop.f32.mrb[0].mxu0
      %v2307 = vadd.f32 %v2106, %v2306
      %v2308 = vpop.f32.mrb[0].mxu0
      %2309 = vmatprep.mubr.bf16.mxu0 0
      %2310 = vmatmul.mubr.bf16.gmra.mrb[0].mxu0 %v2224
      %v2311 = vpop.f32.mrb[0].mxu0
      %v2312 = vadd.f32 %v2111, %v2311
      %v2313 = vpop.f32.mrb[0].mxu0
      %v2314 = vpop.f32.mrb[0].mxu0
      %v2315 = vadd.f32 %v2114, %v2314
      %v2316 = vpop.f32.mrb[0].mxu0
      %2317 = vmatprep.mubr.bf16.mxu0 0
      %2318 = vmatmul.mubr.bf16.gmra.mrb[0].mxu0 %v2226
      %v2319 = vpop.f32.mrb[0].mxu0
      %v2320 = vadd.f32 %v2119, %v2319
      %v2321 = vpop.f32.mrb[0].mxu0
      %v2322 = vpop.f32.mrb[0].mxu0
      %v2323 = vadd.f32 %v2122, %v2322
      %v2324 = vpop.f32.mrb[0].mxu0
      %2325 = vmatprep.mubr.bf16.mxu0 0
      %2326 = vmatmul.mubr.bf16.gmra.mrb[0].mxu0 %v2228
      %v2327 = vpop.f32.mrb[0].mxu0
      %v2328 = vadd.f32 %v2127, %v2327
      %v2329 = vpop.f32.mrb[0].mxu0
      %v2330 = vpop.f32.mrb[0].mxu0
      %v2331 = vadd.f32 %v2130, %v2330
      %v2332 = vpop.f32.mrb[0].mxu0
      %2333 = vmatprep.mubr.bf16.mxu0 0
      %2334 = vmatmul.mubr.bf16.gmra.mrb[0].mxu0 %v2230
      %v2335 = vpop.f32.mrb[0].mxu0
      %v2336 = vadd.f32 %v2135, %v2335
      %v2337 = vpop.f32.mrb[0].mxu0
      %v2338 = vpop.f32.mrb[0].mxu0
      %v2339 = vadd.f32 %v2138, %v2338
      %v2340 = vpop.f32.mrb[0].mxu0
      %2341 = vmatprep.mubr.bf16.mxu0 0
      %2342 = vmatmul.mubr.bf16.gmra.mrb[0].mxu0 %v2232
      %v2343 = vpop.f32.mrb[0].mxu0
      %v2344 = vadd.f32 %v2143, %v2343
      %v2345 = vpop.f32.mrb[0].mxu0
      %v2346 = vpop.f32.mrb[0].mxu0
      %v2347 = vadd.f32 %v2146, %v2346
      %v2348 = vpop.f32.mrb[0].mxu0
      %2349 = vmatprep.mubr.bf16.mxu0 0
      %2350 = vmatmul.mubr.bf16.gmra.mrb[0].mxu0 %v2234
      %v2351 = vpop.f32.mrb[0].mxu0
      %v2352 = vadd.f32 %v2151, %v2351
      %v2353 = vpop.f32.mrb[0].mxu0
      %v2354 = vpop.f32.mrb[0].mxu0
      %v2355 = vadd.f32 %v2154, %v2354
      %v2356 = vpop.f32.mrb[0].mxu0
      %2357 = vmatprep.mubr.bf16.mxu0 0
      %2358 = vmatmul.mubr.bf16.gmra.mrb[0].mxu0 %v2236
      %v2359 = vpop.f32.mrb[0].mxu0
      %v2360 = vadd.f32 %v2159, %v2359
      %v2361 = vpop.f32.mrb[0].mxu0
      %v2362 = vpop.f32.mrb[0].mxu0
      %v2363 = vadd.f32 %v2162, %v2362
      %v2364 = vpop.f32.mrb[0].mxu0
      %2365 = vmatprep.mubr.bf16.mxu0 0
      %2366 = vmatmul.mubr.bf16.gmra.mrb[0].mxu0 %v2238
      %v2367 = vpop.f32.mrb[0].mxu0
      %v2368 = vadd.f32 %v2167, %v2367
      %v2369 = vpop.f32.mrb[0].mxu0
      %v2370 = vpop.f32.mrb[0].mxu0
      %v2371 = vadd.f32 %v2170, %v2370
      %v2372 = vpop.f32.mrb[0].mxu0
      %2373 = vmatprep.mubr.bf16.mxu0 0
      %2374 = vmatmul.mubr.bf16.gmra.mrb[0].mxu0 %v2240
      %v2375 = vpop.f32.mrb[0].mxu0
      %v2376 = vadd.f32 %v2175, %v2375
      %v2377 = vpop.f32.mrb[0].mxu0
      %v2378 = vpop.f32.mrb[0].mxu0
      %v2379 = vadd.f32 %v2178, %v2378
      %v2380 = vpop.f32.mrb[0].mxu0
      %2381 = vmatprep.mubr.bf16.mxu0 0
      %2382 = vmatmul.mubr.bf16.gmra.mrb[0].mxu0 %v2242
      %v2383 = vpop.f32.mrb[0].mxu0
      %v2384 = vadd.f32 %v2183, %v2383
      %v2385 = vpop.f32.mrb[0].mxu0
      %v2386 = vpop.f32.mrb[0].mxu0
      %v2387 = vadd.f32 %v2186, %v2386
      %v2388 = vpop.f32.mrb[0].mxu0
      %2389 = vmatprep.mubr.bf16.mxu0 0
      %2390 = vmatmul.mubr.bf16.gmra.mrb[0].mxu0 %v2244
      %v2391 = vpop.f32.mrb[0].mxu0
      %v2392 = vadd.f32 %v2191, %v2391
      %v2393 = vpop.f32.mrb[0].mxu0
      %v2394 = vpop.f32.mrb[0].mxu0
      %v2395 = vadd.f32 %v2194, %v2394
      %v2396 = vpop.f32.mrb[0].mxu0
      %2397 = vmatprep.mubr.bf16.mxu0 0
      %2398 = vmatmul.mubr.bf16.gmra.mrb[0].mxu0 %v2246
      %v2399 = vpop.f32.mrb[0].mxu0
      %v2400 = vadd.f32 %v2199, %v2399
      %v2401 = vpop.f32.mrb[0].mxu0
      %v2402 = vpop.f32.mrb[0].mxu0
      %v2403 = vadd.f32 %v2202, %v2402
      %v2404 = vpop.f32.mrb[0].mxu0
      %2405 = vmatprep.mubr.bf16.mxu0 0
      %2406 = vmatmul.mubr.bf16.gmra.mrb[0].mxu0 %v2248
      %v2407 = vpop.f32.mrb[0].mxu0
      %v2408 = vadd.f32 %v2207, %v2407
      %v2409 = vpop.f32.mrb[0].mxu0
      %v2410 = vpop.f32.mrb[0].mxu0
      %v2411 = vadd.f32 %v2210, %v2410
      %v2412 = vpop.f32.mrb[0].mxu0
      %2413 = vdwg.mxu0
      %s2414 = scalar_lea.vmem %s165, 24
      %v2415 = vld [vmem:[%s2414] sm:$0xf]
      %v2416 = vld [vmem:[%s2414 + $0x4] sm:$0xf]
      %v2417 = vld [vmem:[%s2414 + $0xc] sm:$0xf]
      %v2418 = vld [vmem:[%s2414 + $0x10] sm:$0xf]
      %v2419 = vld [vmem:[%s2414 + $0x18] sm:$0xf]
      %v2420 = vld [vmem:[%s2414 + $0x1c] sm:$0xf]
      %v2421 = vld [vmem:[%s2414 + $0x24] sm:$0xf]
      %v2422 = vld [vmem:[%s2414 + $0x28] sm:$0xf]
      %v2423 = vld [vmem:[%s2414 + $0x30] sm:$0xf]
      %v2424 = vld [vmem:[%s2414 + $0x34] sm:$0xf]
      %v2425 = vld [vmem:[%s2414 + $0x3c] sm:$0xf]
      %v2426 = vld [vmem:[%s2414 + $0x40] sm:$0xf]
      %v2427 = vld [vmem:[%s2414 + $0x48] sm:$0xf]
      %v2428 = vld [vmem:[%s2414 + $0x4c] sm:$0xf]
      %v2429 = vld [vmem:[%s2414 + $0x54] sm:$0xf]
      %v2430 = vld [vmem:[%s2414 + $0x58] sm:$0xf]
      %v2431 = vld [vmem:[%s2414 + $0x60] sm:$0xf]
      %v2432 = vld [vmem:[%s2414 + $0x64] sm:$0xf]
      %v2433 = vld [vmem:[%s2414 + $0x6c] sm:$0xf]
      %v2434 = vld [vmem:[%s2414 + $0x70] sm:$0xf]
      %v2435 = vld [vmem:[%s2414 + $0x78] sm:$0xf]
      %v2436 = vld [vmem:[%s2414 + $0x7c] sm:$0xf]
      %v2437 = vld [vmem:[%s2414 + $0x84] sm:$0xf]
      %v2438 = vld [vmem:[%s2414 + $0x88] sm:$0xf]
      %v2439 = vld [vmem:[%s2414 + $0x90] sm:$0xf]
      %v2440 = vld [vmem:[%s2414 + $0x94] sm:$0xf]
      %v2441 = vld [vmem:[%s2414 + $0x9c] sm:$0xf]
      %v2442 = vld [vmem:[%s2414 + $0xa0] sm:$0xf]
      %v2443 = vld [vmem:[%s2414 + $0xa8] sm:$0xf]
      %v2444 = vld [vmem:[%s2414 + $0xac] sm:$0xf]
      %v2445 = vld [vmem:[%s2414 + $0xb4] sm:$0xf]
      %v2446 = vld [vmem:[%s2414 + $0xb8] sm:$0xf]
      %v2447 = vld [vmem:[%s2414 + $0x8] sm:$0x1]
      %v2448 = vld [vmem:[%s2414 + $0x14] sm:$0x1]
      %v2449 = vld [vmem:[%s2414 + $0x20] sm:$0x1]
      %v2450 = vld [vmem:[%s2414 + $0x2c] sm:$0x1]
      %v2451 = vld [vmem:[%s2414 + $0x38] sm:$0x1]
      %v2452 = vld [vmem:[%s2414 + $0x44] sm:$0x1]
      %v2453 = vld [vmem:[%s2414 + $0x50] sm:$0x1]
      %v2454 = vld [vmem:[%s2414 + $0x5c] sm:$0x1]
      %v2455 = vld [vmem:[%s2414 + $0x68] sm:$0x1]
      %v2456 = vld [vmem:[%s2414 + $0x74] sm:$0x1]
      %v2457 = vld [vmem:[%s2414 + $0x80] sm:$0x1]
      %v2458 = vld [vmem:[%s2414 + $0x8c] sm:$0x1]
      %v2459 = vld [vmem:[%s2414 + $0x98] sm:$0x1]
      %v2460 = vld [vmem:[%s2414 + $0xa4] sm:$0x1]
      %v2461 = vld [vmem:[%s2414 + $0xb0] sm:$0x1]
      %v2462 = vld [vmem:[%s2414 + $0xbc] sm:$0x1]
      %v2464 = vshrl.u32 %v2415, 16
      %v2466 = vrot.slane %v2464, 4
      %v2467 = vshll.u32 %v2415, 16
      %v2469 = vrot.slane %v2467, 5
      %v2470 = vor.u32 %v2466, %v2469
      %v2471 = vrot.slane %v2470, 4
      %v2473 = vshll.u32 %v2416, 16
      %v2475 = vrot.slane %v2473, 5
      %v2476 = vsel %vm222, %v2471, %v2475
      %v2477 = vshrl.u32 %v2416, 16
      %v2479 = vrot.slane %v2477, 4
      %v2480 = vor.u32 %v2479, %v2475
      %v2481 = vrot.slane %v2480, 4
      %v2483 = vshll.u32 %v2447, 16
      %v2485 = vrot.slane %v2483, 5
      %v2486 = vsel %vm222, %v2481, %v2485
      %v2488 = vshrl.u32 %v2417, 16
      %v2490 = vrot.slane %v2488, 4
      %v2491 = vshll.u32 %v2417, 16
      %v2493 = vrot.slane %v2491, 5
      %v2494 = vor.u32 %v2490, %v2493
      %v2495 = vrot.slane %v2494, 4
      %v2497 = vshll.u32 %v2418, 16
      %v2499 = vrot.slane %v2497, 5
      %v2500 = vsel %vm222, %v2495, %v2499
      %v2501 = vshrl.u32 %v2418, 16
      %v2503 = vrot.slane %v2501, 4
      %v2504 = vor.u32 %v2503, %v2499
      %v2505 = vrot.slane %v2504, 4
      %v2507 = vshll.u32 %v2448, 16
      %v2509 = vrot.slane %v2507, 5
      %v2510 = vsel %vm222, %v2505, %v2509
      %v2512 = vshrl.u32 %v2419, 16
      %v2514 = vrot.slane %v2512, 4
      %v2515 = vshll.u32 %v2419, 16
      %v2517 = vrot.slane %v2515, 5
      %v2518 = vor.u32 %v2514, %v2517
      %v2519 = vrot.slane %v2518, 4
      %v2521 = vshll.u32 %v2420, 16
      %v2523 = vrot.slane %v2521, 5
      %v2524 = vsel %vm222, %v2519, %v2523
      %v2525 = vshrl.u32 %v2420, 16
      %v2527 = vrot.slane %v2525, 4
      %v2528 = vor.u32 %v2527, %v2523
      %v2529 = vrot.slane %v2528, 4
      %v2531 = vshll.u32 %v2449, 16
      %v2533 = vrot.slane %v2531, 5
      %v2534 = vsel %vm222, %v2529, %v2533
      %v2536 = vshrl.u32 %v2421, 16
      %v2538 = vrot.slane %v2536, 4
      %v2539 = vshll.u32 %v2421, 16
      %v2541 = vrot.slane %v2539, 5
      %v2542 = vor.u32 %v2538, %v2541
      %v2543 = vrot.slane %v2542, 4
      %v2545 = vshll.u32 %v2422, 16
      %v2547 = vrot.slane %v2545, 5
      %v2548 = vsel %vm222, %v2543, %v2547
      %v2549 = vshrl.u32 %v2422, 16
      %v2551 = vrot.slane %v2549, 4
      %v2552 = vor.u32 %v2551, %v2547
      %v2553 = vrot.slane %v2552, 4
      %v2555 = vshll.u32 %v2450, 16
      %v2557 = vrot.slane %v2555, 5
      %v2558 = vsel %vm222, %v2553, %v2557
      %v2560 = vshrl.u32 %v2423, 16
      %v2562 = vrot.slane %v2560, 4
      %v2563 = vshll.u32 %v2423, 16
      %v2565 = vrot.slane %v2563, 5
      %v2566 = vor.u32 %v2562, %v2565
      %v2567 = vrot.slane %v2566, 4
      %v2569 = vshll.u32 %v2424, 16
      %v2571 = vrot.slane %v2569, 5
      %v2572 = vsel %vm222, %v2567, %v2571
      %v2573 = vshrl.u32 %v2424, 16
      %v2575 = vrot.slane %v2573, 4
      %v2576 = vor.u32 %v2575, %v2571
      %v2577 = vrot.slane %v2576, 4
      %v2579 = vshll.u32 %v2451, 16
      %v2581 = vrot.slane %v2579, 5
      %v2582 = vsel %vm222, %v2577, %v2581
      %v2584 = vshrl.u32 %v2425, 16
      %v2586 = vrot.slane %v2584, 4
      %v2587 = vshll.u32 %v2425, 16
      %v2589 = vrot.slane %v2587, 5
      %v2590 = vor.u32 %v2586, %v2589
      %v2591 = vrot.slane %v2590, 4
      %v2593 = vshll.u32 %v2426, 16
      %v2595 = vrot.slane %v2593, 5
      %v2596 = vsel %vm222, %v2591, %v2595
      %v2597 = vshrl.u32 %v2426, 16
      %v2599 = vrot.slane %v2597, 4
      %v2600 = vor.u32 %v2599, %v2595
      %v2601 = vrot.slane %v2600, 4
      %v2603 = vshll.u32 %v2452, 16
      %v2605 = vrot.slane %v2603, 5
      %v2606 = vsel %vm222, %v2601, %v2605
      %v2608 = vshrl.u32 %v2427, 16
      %v2610 = vrot.slane %v2608, 4
      %v2611 = vshll.u32 %v2427, 16
      %v2613 = vrot.slane %v2611, 5
      %v2614 = vor.u32 %v2610, %v2613
      %v2615 = vrot.slane %v2614, 4
      %v2617 = vshll.u32 %v2428, 16
      %v2619 = vrot.slane %v2617, 5
      %v2620 = vsel %vm222, %v2615, %v2619
      %v2621 = vshrl.u32 %v2428, 16
      %v2623 = vrot.slane %v2621, 4
      %v2624 = vor.u32 %v2623, %v2619
      %v2625 = vrot.slane %v2624, 4
      %v2627 = vshll.u32 %v2453, 16
      %v2629 = vrot.slane %v2627, 5
      %v2630 = vsel %vm222, %v2625, %v2629
      %v2632 = vshrl.u32 %v2429, 16
      %v2634 = vrot.slane %v2632, 4
      %v2635 = vshll.u32 %v2429, 16
      %v2637 = vrot.slane %v2635, 5
      %v2638 = vor.u32 %v2634, %v2637
      %v2639 = vrot.slane %v2638, 4
      %v2641 = vshll.u32 %v2430, 16
      %v2643 = vrot.slane %v2641, 5
      %v2644 = vsel %vm222, %v2639, %v2643
      %v2645 = vshrl.u32 %v2430, 16
      %v2647 = vrot.slane %v2645, 4
      %v2648 = vor.u32 %v2647, %v2643
      %v2649 = vrot.slane %v2648, 4
      %v2651 = vshll.u32 %v2454, 16
      %v2653 = vrot.slane %v2651, 5
      %v2654 = vsel %vm222, %v2649, %v2653
      %v2656 = vshrl.u32 %v2431, 16
      %v2658 = vrot.slane %v2656, 4
      %v2659 = vshll.u32 %v2431, 16
      %v2661 = vrot.slane %v2659, 5
      %v2662 = vor.u32 %v2658, %v2661
      %v2663 = vrot.slane %v2662, 4
      %v2665 = vshll.u32 %v2432, 16
      %v2667 = vrot.slane %v2665, 5
      %v2668 = vsel %vm222, %v2663, %v2667
      %v2669 = vshrl.u32 %v2432, 16
      %v2671 = vrot.slane %v2669, 4
      %v2672 = vor.u32 %v2671, %v2667
      %v2673 = vrot.slane %v2672, 4
      %v2675 = vshll.u32 %v2455, 16
      %v2677 = vrot.slane %v2675, 5
      %v2678 = vsel %vm222, %v2673, %v2677
      %v2680 = vshrl.u32 %v2433, 16
      %v2682 = vrot.slane %v2680, 4
      %v2683 = vshll.u32 %v2433, 16
      %v2685 = vrot.slane %v2683, 5
      %v2686 = vor.u32 %v2682, %v2685
      %v2687 = vrot.slane %v2686, 4
      %v2689 = vshll.u32 %v2434, 16
      %v2691 = vrot.slane %v2689, 5
      %v2692 = vsel %vm222, %v2687, %v2691
      %v2693 = vshrl.u32 %v2434, 16
      %v2695 = vrot.slane %v2693, 4
      %v2696 = vor.u32 %v2695, %v2691
      %v2697 = vrot.slane %v2696, 4
      %v2699 = vshll.u32 %v2456, 16
      %v2701 = vrot.slane %v2699, 5
      %v2702 = vsel %vm222, %v2697, %v2701
      %v2704 = vshrl.u32 %v2435, 16
      %v2706 = vrot.slane %v2704, 4
      %v2707 = vshll.u32 %v2435, 16
      %v2709 = vrot.slane %v2707, 5
      %v2710 = vor.u32 %v2706, %v2709
      %v2711 = vrot.slane %v2710, 4
      %v2713 = vshll.u32 %v2436, 16
      %v2715 = vrot.slane %v2713, 5
      %v2716 = vsel %vm222, %v2711, %v2715
      %v2717 = vshrl.u32 %v2436, 16
      %v2719 = vrot.slane %v2717, 4
      %v2720 = vor.u32 %v2719, %v2715
      %v2721 = vrot.slane %v2720, 4
      %v2723 = vshll.u32 %v2457, 16
      %v2725 = vrot.slane %v2723, 5
      %v2726 = vsel %vm222, %v2721, %v2725
      %v2728 = vshrl.u32 %v2437, 16
      %v2730 = vrot.slane %v2728, 4
      %v2731 = vshll.u32 %v2437, 16
      %v2733 = vrot.slane %v2731, 5
      %v2734 = vor.u32 %v2730, %v2733
      %v2735 = vrot.slane %v2734, 4
      %v2737 = vshll.u32 %v2438, 16
      %v2739 = vrot.slane %v2737, 5
      %v2740 = vsel %vm222, %v2735, %v2739
      %v2741 = vshrl.u32 %v2438, 16
      %v2743 = vrot.slane %v2741, 4
      %v2744 = vor.u32 %v2743, %v2739
      %v2745 = vrot.slane %v2744, 4
      %v2747 = vshll.u32 %v2458, 16
      %v2749 = vrot.slane %v2747, 5
      %v2750 = vsel %vm222, %v2745, %v2749
      %v2752 = vshrl.u32 %v2439, 16
      %v2754 = vrot.slane %v2752, 4
      %v2755 = vshll.u32 %v2439, 16
      %v2757 = vrot.slane %v2755, 5
      %v2758 = vor.u32 %v2754, %v2757
      %v2759 = vrot.slane %v2758, 4
      %v2761 = vshll.u32 %v2440, 16
      %v2763 = vrot.slane %v2761, 5
      %v2764 = vsel %vm222, %v2759, %v2763
      %v2765 = vshrl.u32 %v2440, 16
      %v2767 = vrot.slane %v2765, 4
      %v2768 = vor.u32 %v2767, %v2763
      %v2769 = vrot.slane %v2768, 4
      %v2771 = vshll.u32 %v2459, 16
      %v2773 = vrot.slane %v2771, 5
      %v2774 = vsel %vm222, %v2769, %v2773
      %v2776 = vshrl.u32 %v2441, 16
      %v2778 = vrot.slane %v2776, 4
      %v2779 = vshll.u32 %v2441, 16
      %v2781 = vrot.slane %v2779, 5
      %v2782 = vor.u32 %v2778, %v2781
      %v2783 = vrot.slane %v2782, 4
      %v2785 = vshll.u32 %v2442, 16
      %v2787 = vrot.slane %v2785, 5
      %v2788 = vsel %vm222, %v2783, %v2787
      %v2789 = vshrl.u32 %v2442, 16
      %v2791 = vrot.slane %v2789, 4
      %v2792 = vor.u32 %v2791, %v2787
      %v2793 = vrot.slane %v2792, 4
      %v2795 = vshll.u32 %v2460, 16
      %v2797 = vrot.slane %v2795, 5
      %v2798 = vsel %vm222, %v2793, %v2797
      %v2800 = vshrl.u32 %v2443, 16
      %v2802 = vrot.slane %v2800, 4
      %v2803 = vshll.u32 %v2443, 16
      %v2805 = vrot.slane %v2803, 5
      %v2806 = vor.u32 %v2802, %v2805
      %v2807 = vrot.slane %v2806, 4
      %v2809 = vshll.u32 %v2444, 16
      %v2811 = vrot.slane %v2809, 5
      %v2812 = vsel %vm222, %v2807, %v2811
      %v2813 = vshrl.u32 %v2444, 16
      %v2815 = vrot.slane %v2813, 4
      %v2816 = vor.u32 %v2815, %v2811
      %v2817 = vrot.slane %v2816, 4
      %v2819 = vshll.u32 %v2461, 16
      %v2821 = vrot.slane %v2819, 5
      %v2822 = vsel %vm222, %v2817, %v2821
      %v2824 = vshrl.u32 %v2445, 16
      %v2826 = vrot.slane %v2824, 4
      %v2827 = vshll.u32 %v2445, 16
      %v2829 = vrot.slane %v2827, 5
      %v2830 = vor.u32 %v2826, %v2829
      %v2831 = vrot.slane %v2830, 4
      %v2833 = vshll.u32 %v2446, 16
      %v2835 = vrot.slane %v2833, 5
      %v2836 = vsel %vm222, %v2831, %v2835
      %v2837 = vshrl.u32 %v2446, 16
      %v2839 = vrot.slane %v2837, 4
      %v2840 = vor.u32 %v2839, %v2835
      %v2841 = vrot.slane %v2840, 4
      %v2843 = vshll.u32 %v2462, 16
      %v2845 = vrot.slane %v2843, 5
      %v2846 = vsel %vm222, %v2841, %v2845
      %v2847 = vld [vmem:[%s2414] sm:$0xe]
      %v2848 = vld [vmem:[%s2414 + $0xc] sm:$0xe]
      %v2849 = vld [vmem:[%s2414 + $0x18] sm:$0xe]
      %v2850 = vld [vmem:[%s2414 + $0x24] sm:$0xe]
      %v2851 = vld [vmem:[%s2414 + $0x30] sm:$0xe]
      %v2852 = vld [vmem:[%s2414 + $0x3c] sm:$0xe]
      %v2853 = vld [vmem:[%s2414 + $0x48] sm:$0xe]
      %v2854 = vld [vmem:[%s2414 + $0x54] sm:$0xe]
      %v2855 = vld [vmem:[%s2414 + $0x60] sm:$0xe]
      %v2856 = vld [vmem:[%s2414 + $0x6c] sm:$0xe]
      %v2857 = vld [vmem:[%s2414 + $0x78] sm:$0xe]
      %v2858 = vld [vmem:[%s2414 + $0x84] sm:$0xe]
      %v2859 = vld [vmem:[%s2414 + $0x90] sm:$0xe]
      %v2860 = vld [vmem:[%s2414 + $0x9c] sm:$0xe]
      %v2861 = vld [vmem:[%s2414 + $0xa8] sm:$0xe]
      %v2862 = vld [vmem:[%s2414 + $0xb4] sm:$0xe]
      %v2911 = vrot.slane %v2847, 5
      %v2912 = vrot.slane %v2911, 4
      %v2913 = vrot.slane %v2416, 5
      %v2914 = vsel %vm673, %v2912, %v2913
      %v2915 = vrot.slane %v2913, 4
      %v2916 = vrot.slane %v2447, 5
      %v2917 = vsel %vm673, %v2915, %v2916
      %v2918 = vrot.slane %v2848, 5
      %v2919 = vrot.slane %v2918, 4
      %v2920 = vrot.slane %v2418, 5
      %v2921 = vsel %vm673, %v2919, %v2920
      %v2922 = vrot.slane %v2920, 4
      %v2923 = vrot.slane %v2448, 5
      %v2924 = vsel %vm673, %v2922, %v2923
      %v2925 = vrot.slane %v2849, 5
      %v2926 = vrot.slane %v2925, 4
      %v2927 = vrot.slane %v2420, 5
      %v2928 = vsel %vm673, %v2926, %v2927
      %v2929 = vrot.slane %v2927, 4
      %v2930 = vrot.slane %v2449, 5
      %v2931 = vsel %vm673, %v2929, %v2930
      %v2932 = vrot.slane %v2850, 5
      %v2933 = vrot.slane %v2932, 4
      %v2934 = vrot.slane %v2422, 5
      %v2935 = vsel %vm673, %v2933, %v2934
      %v2936 = vrot.slane %v2934, 4
      %v2937 = vrot.slane %v2450, 5
      %v2938 = vsel %vm673, %v2936, %v2937
      %v2939 = vrot.slane %v2851, 5
      %v2940 = vrot.slane %v2939, 4
      %v2941 = vrot.slane %v2424, 5
      %v2942 = vsel %vm673, %v2940, %v2941
      %v2943 = vrot.slane %v2941, 4
      %v2944 = vrot.slane %v2451, 5
      %v2945 = vsel %vm673, %v2943, %v2944
      %v2946 = vrot.slane %v2852, 5
      %v2947 = vrot.slane %v2946, 4
      %v2948 = vrot.slane %v2426, 5
      %v2949 = vsel %vm673, %v2947, %v2948
      %v2950 = vrot.slane %v2948, 4
      %v2951 = vrot.slane %v2452, 5
      %v2952 = vsel %vm673, %v2950, %v2951
      %v2953 = vrot.slane %v2853, 5
      %v2954 = vrot.slane %v2953, 4
      %v2955 = vrot.slane %v2428, 5
      %v2956 = vsel %vm673, %v2954, %v2955
      %v2957 = vrot.slane %v2955, 4
      %v2958 = vrot.slane %v2453, 5
      %v2959 = vsel %vm673, %v2957, %v2958
      %v2960 = vrot.slane %v2854, 5
      %v2961 = vrot.slane %v2960, 4
      %v2962 = vrot.slane %v2430, 5
      %v2963 = vsel %vm673, %v2961, %v2962
      %v2964 = vrot.slane %v2962, 4
      %v2965 = vrot.slane %v2454, 5
      %v2966 = vsel %vm673, %v2964, %v2965
      %v2967 = vrot.slane %v2855, 5
      %v2968 = vrot.slane %v2967, 4
      %v2969 = vrot.slane %v2432, 5
      %v2970 = vsel %vm673, %v2968, %v2969
      %v2971 = vrot.slane %v2969, 4
      %v2972 = vrot.slane %v2455, 5
      %v2973 = vsel %vm673, %v2971, %v2972
      %v2974 = vrot.slane %v2856, 5
      %v2975 = vrot.slane %v2974, 4
      %v2976 = vrot.slane %v2434, 5
      %v2977 = vsel %vm673, %v2975, %v2976
      %v2978 = vrot.slane %v2976, 4
      %v2979 = vrot.slane %v2456, 5
      %v2980 = vsel %vm673, %v2978, %v2979
      %v2981 = vrot.slane %v2857, 5
      %v2982 = vrot.slane %v2981, 4
      %v2983 = vrot.slane %v2436, 5
      %v2984 = vsel %vm673, %v2982, %v2983
      %v2985 = vrot.slane %v2983, 4
      %v2986 = vrot.slane %v2457, 5
      %v2987 = vsel %vm673, %v2985, %v2986
      %v2988 = vrot.slane %v2858, 5
      %v2989 = vrot.slane %v2988, 4
      %v2990 = vrot.slane %v2438, 5
      %v2991 = vsel %vm673, %v2989, %v2990
      %v2992 = vrot.slane %v2990, 4
      %v2993 = vrot.slane %v2458, 5
      %v2994 = vsel %vm673, %v2992, %v2993
      %v2995 = vrot.slane %v2859, 5
      %v2996 = vrot.slane %v2995, 4
      %v2997 = vrot.slane %v2440, 5
      %v2998 = vsel %vm673, %v2996, %v2997
      %v2999 = vrot.slane %v2997, 4
      %v3000 = vrot.slane %v2459, 5
      %v3001 = vsel %vm673, %v2999, %v3000
      %v3002 = vrot.slane %v2860, 5
      %v3003 = vrot.slane %v3002, 4
      %v3004 = vrot.slane %v2442, 5
      %v3005 = vsel %vm673, %v3003, %v3004
      %v3006 = vrot.slane %v3004, 4
      %v3007 = vrot.slane %v2460, 5
      %v3008 = vsel %vm673, %v3006, %v3007
      %v3009 = vrot.slane %v2861, 5
      %v3010 = vrot.slane %v3009, 4
      %v3011 = vrot.slane %v2444, 5
      %v3012 = vsel %vm673, %v3010, %v3011
      %v3013 = vrot.slane %v3011, 4
      %v3014 = vrot.slane %v2461, 5
      %v3015 = vsel %vm673, %v3013, %v3014
      %v3016 = vrot.slane %v2862, 5
      %v3017 = vrot.slane %v3016, 4
      %v3018 = vrot.slane %v2446, 5
      %v3019 = vsel %vm673, %v3017, %v3018
      %v3020 = vrot.slane %v3018, 4
      %v3021 = vrot.slane %v2462, 5
      %v3022 = vsel %vm673, %v3020, %v3021
      %v3039 = vunpack.c.l.b16 %v2415
      %v3040 = vunpack.c.l.b16 %v2416
      %v3041 = vunpack.c.l.b16 %v2417
      %v3042 = vunpack.c.l.b16 %v2418
      %v3043 = vunpack.c.l.b16 %v2419
      %v3044 = vunpack.c.l.b16 %v2420
      %v3045 = vunpack.c.l.b16 %v2421
      %v3046 = vunpack.c.l.b16 %v2422
      %v3047 = vunpack.c.l.b16 %v2423
      %v3048 = vunpack.c.l.b16 %v2424
      %v3049 = vunpack.c.l.b16 %v2425
      %v3050 = vunpack.c.l.b16 %v2426
      %v3051 = vunpack.c.l.b16 %v2427
      %v3052 = vunpack.c.l.b16 %v2428
      %v3053 = vunpack.c.l.b16 %v2429
      %v3054 = vunpack.c.l.b16 %v2430
      %v3055 = vunpack.c.l.b16 %v2431
      %v3056 = vunpack.c.l.b16 %v2432
      %v3057 = vunpack.c.l.b16 %v2433
      %v3058 = vunpack.c.l.b16 %v2434
      %v3059 = vunpack.c.l.b16 %v2435
      %v3060 = vunpack.c.l.b16 %v2436
      %v3061 = vunpack.c.l.b16 %v2437
      %v3062 = vunpack.c.l.b16 %v2438
      %v3063 = vunpack.c.l.b16 %v2439
      %v3064 = vunpack.c.l.b16 %v2440
      %v3065 = vunpack.c.l.b16 %v2441
      %v3066 = vunpack.c.l.b16 %v2442
      %v3067 = vunpack.c.l.b16 %v2443
      %v3068 = vunpack.c.l.b16 %v2444
      %v3069 = vunpack.c.l.b16 %v2445
      %v3070 = vunpack.c.l.b16 %v2446
      %v3071 = vpack.c.b16 %v3040, %v3039
      %v3072 = vpack.c.b16 %v3042, %v3041
      %v3073 = vpack.c.b16 %v3044, %v3043
      %v3074 = vpack.c.b16 %v3046, %v3045
      %v3075 = vpack.c.b16 %v3048, %v3047
      %v3076 = vpack.c.b16 %v3050, %v3049
      %v3077 = vpack.c.b16 %v3052, %v3051
      %v3078 = vpack.c.b16 %v3054, %v3053
      %v3079 = vpack.c.b16 %v3056, %v3055
      %v3080 = vpack.c.b16 %v3058, %v3057
      %v3081 = vpack.c.b16 %v3060, %v3059
      %v3082 = vpack.c.b16 %v3062, %v3061
      %v3083 = vpack.c.b16 %v3064, %v3063
      %v3084 = vpack.c.b16 %v3066, %v3065
      %v3085 = vpack.c.b16 %v3068, %v3067
      %v3086 = vpack.c.b16 %v3070, %v3069
      %v3087 = vunpack.c.l.b16 %v2476
      %v3088 = vunpack.c.l.b16 %v2486
      %v3089 = vunpack.c.l.b16 %v2500
      %v3090 = vunpack.c.l.b16 %v2510
      %v3091 = vunpack.c.l.b16 %v2524
      %v3092 = vunpack.c.l.b16 %v2534
      %v3093 = vunpack.c.l.b16 %v2548
      %v3094 = vunpack.c.l.b16 %v2558
      %v3095 = vunpack.c.l.b16 %v2572
      %v3096 = vunpack.c.l.b16 %v2582
      %v3097 = vunpack.c.l.b16 %v2596
      %v3098 = vunpack.c.l.b16 %v2606
      %v3099 = vunpack.c.l.b16 %v2620
      %v3100 = vunpack.c.l.b16 %v2630
      %v3101 = vunpack.c.l.b16 %v2644
      %v3102 = vunpack.c.l.b16 %v2654
      %v3103 = vunpack.c.l.b16 %v2668
      %v3104 = vunpack.c.l.b16 %v2678
      %v3105 = vunpack.c.l.b16 %v2692
      %v3106 = vunpack.c.l.b16 %v2702
      %v3107 = vunpack.c.l.b16 %v2716
      %v3108 = vunpack.c.l.b16 %v2726
      %v3109 = vunpack.c.l.b16 %v2740
      %v3110 = vunpack.c.l.b16 %v2750
      %v3111 = vunpack.c.l.b16 %v2764
      %v3112 = vunpack.c.l.b16 %v2774
      %v3113 = vunpack.c.l.b16 %v2788
      %v3114 = vunpack.c.l.b16 %v2798
      %v3115 = vunpack.c.l.b16 %v2812
      %v3116 = vunpack.c.l.b16 %v2822
      %v3117 = vunpack.c.l.b16 %v2836
      %v3118 = vunpack.c.l.b16 %v2846
      %v3119 = vpack.c.b16 %v3088, %v3087
      %v3120 = vpack.c.b16 %v3090, %v3089
      %v3121 = vpack.c.b16 %v3092, %v3091
      %v3122 = vpack.c.b16 %v3094, %v3093
      %v3123 = vpack.c.b16 %v3096, %v3095
      %v3124 = vpack.c.b16 %v3098, %v3097
      %v3125 = vpack.c.b16 %v3100, %v3099
      %v3126 = vpack.c.b16 %v3102, %v3101
      %v3127 = vpack.c.b16 %v3104, %v3103
      %v3128 = vpack.c.b16 %v3106, %v3105
      %v3129 = vpack.c.b16 %v3108, %v3107
      %v3130 = vpack.c.b16 %v3110, %v3109
      %v3131 = vpack.c.b16 %v3112, %v3111
      %v3132 = vpack.c.b16 %v3114, %v3113
      %v3133 = vpack.c.b16 %v3116, %v3115
      %v3134 = vpack.c.b16 %v3118, %v3117
      %3135 = vrot.lane.b32.xlu0 %v3119, 4
      %v3136 = vpop.permute.xlu0 %3135
      %3137 = vrot.lane.b32.xlu0 %v3120, 4
      %v3138 = vpop.permute.xlu0 %3137
      %3139 = vrot.lane.b32.xlu0 %v3121, 4
      %v3140 = vpop.permute.xlu0 %3139
      %3141 = vrot.lane.b32.xlu0 %v3122, 4
      %v3142 = vpop.permute.xlu0 %3141
      %3143 = vrot.lane.b32.xlu0 %v3123, 4
      %v3144 = vpop.permute.xlu0 %3143
      %3145 = vrot.lane.b32.xlu0 %v3124, 4
      %v3146 = vpop.permute.xlu0 %3145
      %3147 = vrot.lane.b32.xlu0 %v3125, 4
      %v3148 = vpop.permute.xlu0 %3147
      %3149 = vrot.lane.b32.xlu0 %v3126, 4
      %v3150 = vpop.permute.xlu0 %3149
      %3151 = vrot.lane.b32.xlu0 %v3127, 4
      %v3152 = vpop.permute.xlu0 %3151
      %3153 = vrot.lane.b32.xlu0 %v3128, 4
      %v3154 = vpop.permute.xlu0 %3153
      %3155 = vrot.lane.b32.xlu0 %v3129, 4
      %v3156 = vpop.permute.xlu0 %3155
      %3157 = vrot.lane.b32.xlu0 %v3130, 4
      %v3158 = vpop.permute.xlu0 %3157
      %3159 = vrot.lane.b32.xlu0 %v3131, 4
      %v3160 = vpop.permute.xlu0 %3159
      %3161 = vrot.lane.b32.xlu0 %v3132, 4
      %v3162 = vpop.permute.xlu0 %3161
      %3163 = vrot.lane.b32.xlu0 %v3133, 4
      %v3164 = vpop.permute.xlu0 %3163
      %3165 = vrot.lane.b32.xlu0 %v3134, 4
      %v3166 = vpop.permute.xlu0 %3165
      %v3167 = vunpack.c.l.b16 %v2914
      %v3168 = vunpack.c.l.b16 %v2917
      %v3169 = vunpack.c.l.b16 %v2921
      %v3170 = vunpack.c.l.b16 %v2924
      %v3171 = vunpack.c.l.b16 %v2928
      %v3172 = vunpack.c.l.b16 %v2931
      %v3173 = vunpack.c.l.b16 %v2935
      %v3174 = vunpack.c.l.b16 %v2938
      %v3175 = vunpack.c.l.b16 %v2942
      %v3176 = vunpack.c.l.b16 %v2945
      %v3177 = vunpack.c.l.b16 %v2949
      %v3178 = vunpack.c.l.b16 %v2952
      %v3179 = vunpack.c.l.b16 %v2956
      %v3180 = vunpack.c.l.b16 %v2959
      %v3181 = vunpack.c.l.b16 %v2963
      %v3182 = vunpack.c.l.b16 %v2966
      %v3183 = vunpack.c.l.b16 %v2970
      %v3184 = vunpack.c.l.b16 %v2973
      %v3185 = vunpack.c.l.b16 %v2977
      %v3186 = vunpack.c.l.b16 %v2980
      %v3187 = vunpack.c.l.b16 %v2984
      %v3188 = vunpack.c.l.b16 %v2987
      %v3189 = vunpack.c.l.b16 %v2991
      %v3190 = vunpack.c.l.b16 %v2994
      %v3191 = vunpack.c.l.b16 %v2998
      %v3192 = vunpack.c.l.b16 %v3001
      %v3193 = vunpack.c.l.b16 %v3005
      %v3194 = vunpack.c.l.b16 %v3008
      %v3195 = vunpack.c.l.b16 %v3012
      %v3196 = vunpack.c.l.b16 %v3015
      %v3197 = vunpack.c.l.b16 %v3019
      %v3198 = vunpack.c.l.b16 %v3022
      %v3199 = vpack.c.b16 %v3168, %v3167
      %v3200 = vpack.c.b16 %v3170, %v3169
      %v3201 = vpack.c.b16 %v3172, %v3171
      %v3202 = vpack.c.b16 %v3174, %v3173
      %v3203 = vpack.c.b16 %v3176, %v3175
      %v3204 = vpack.c.b16 %v3178, %v3177
      %v3205 = vpack.c.b16 %v3180, %v3179
      %v3206 = vpack.c.b16 %v3182, %v3181
      %v3207 = vpack.c.b16 %v3184, %v3183
      %v3208 = vpack.c.b16 %v3186, %v3185
      %v3209 = vpack.c.b16 %v3188, %v3187
      %v3210 = vpack.c.b16 %v3190, %v3189
      %v3211 = vpack.c.b16 %v3192, %v3191
      %v3212 = vpack.c.b16 %v3194, %v3193
      %v3213 = vpack.c.b16 %v3196, %v3195
      %v3214 = vpack.c.b16 %v3198, %v3197
      %3215 = vrot.lane.b32.xlu0 %v3199, 8
      %v3216 = vpop.permute.xlu0 %3215
      %3217 = vrot.lane.b32.xlu0 %v3200, 8
      %v3218 = vpop.permute.xlu0 %3217
      %3219 = vrot.lane.b32.xlu0 %v3201, 8
      %v3220 = vpop.permute.xlu0 %3219
      %3221 = vrot.lane.b32.xlu0 %v3202, 8
      %v3222 = vpop.permute.xlu0 %3221
      %3223 = vrot.lane.b32.xlu0 %v3203, 8
      %v3224 = vpop.permute.xlu0 %3223
      %3225 = vrot.lane.b32.xlu0 %v3204, 8
      %v3226 = vpop.permute.xlu0 %3225
      %3227 = vrot.lane.b32.xlu0 %v3205, 8
      %v3228 = vpop.permute.xlu0 %3227
      %3229 = vrot.lane.b32.xlu0 %v3206, 8
      %v3230 = vpop.permute.xlu0 %3229
      %3231 = vrot.lane.b32.xlu0 %v3207, 8
      %v3232 = vpop.permute.xlu0 %3231
      %3233 = vrot.lane.b32.xlu0 %v3208, 8
      %v3234 = vpop.permute.xlu0 %3233
      %3235 = vrot.lane.b32.xlu0 %v3209, 8
      %v3236 = vpop.permute.xlu0 %3235
      %3237 = vrot.lane.b32.xlu0 %v3210, 8
      %v3238 = vpop.permute.xlu0 %3237
      %3239 = vrot.lane.b32.xlu0 %v3211, 8
      %v3240 = vpop.permute.xlu0 %3239
      %3241 = vrot.lane.b32.xlu0 %v3212, 8
      %v3242 = vpop.permute.xlu0 %3241
      %3243 = vrot.lane.b32.xlu0 %v3213, 8
      %v3244 = vpop.permute.xlu0 %3243
      %3245 = vrot.lane.b32.xlu0 %v3214, 8
      %v3246 = vpop.permute.xlu0 %3245
      %v3249 = vsel %vm1010, %v3071, %v3136
      %v3252 = vsel %vm1010, %v3072, %v3138
      %v3255 = vsel %vm1010, %v3073, %v3140
      %v3258 = vsel %vm1010, %v3074, %v3142
      %v3261 = vsel %vm1010, %v3075, %v3144
      %v3264 = vsel %vm1010, %v3076, %v3146
      %v3267 = vsel %vm1010, %v3077, %v3148
      %v3270 = vsel %vm1010, %v3078, %v3150
      %v3273 = vsel %vm1010, %v3079, %v3152
      %v3276 = vsel %vm1010, %v3080, %v3154
      %v3279 = vsel %vm1010, %v3081, %v3156
      %v3282 = vsel %vm1010, %v3082, %v3158
      %v3285 = vsel %vm1010, %v3083, %v3160
      %v3288 = vsel %vm1010, %v3084, %v3162
      %v3291 = vsel %vm1010, %v3085, %v3164
      %v3294 = vsel %vm1010, %v3086, %v3166
      %v3296 = vsel %vm1059, %v3249, %v3216
      %v3298 = vsel %vm1059, %v3252, %v3218
      %v3300 = vsel %vm1059, %v3255, %v3220
      %v3302 = vsel %vm1059, %v3258, %v3222
      %v3304 = vsel %vm1059, %v3261, %v3224
      %v3306 = vsel %vm1059, %v3264, %v3226
      %v3308 = vsel %vm1059, %v3267, %v3228
      %v3310 = vsel %vm1059, %v3270, %v3230
      %v3312 = vsel %vm1059, %v3273, %v3232
      %v3314 = vsel %vm1059, %v3276, %v3234
      %v3316 = vsel %vm1059, %v3279, %v3236
      %v3318 = vsel %vm1059, %v3282, %v3238
      %v3320 = vsel %vm1059, %v3285, %v3240
      %v3322 = vsel %vm1059, %v3288, %v3242
      %v3324 = vsel %vm1059, %v3291, %v3244
      %v3326 = vsel %vm1059, %v3294, %v3246
      %s3327 = scalar_lea.vmem %s1, 16
      %v3328 = vld [vmem:[%s3327] sm:$0xf]
      %v3329 = vld [vmem:[%s3327 + $0x4] sm:$0x3]
      %v3332 = vunpack.c.l.b16 %v3328
      %v3333 = vunpack.c.l.b16 %v3329
      %v3334 = vpack.c.b16 %v3333, %v3332
      %v3335 = vsel %vm2015, %v3296, 0
      %v3337 = vsel %vm2015, %v3298, 0
      %v3339 = vsel %vm2015, %v3300, 0
      %v3341 = vsel %vm2015, %v3302, 0
      %v3343 = vsel %vm2015, %v3304, 0
      %v3345 = vsel %vm2015, %v3306, 0
      %v3347 = vsel %vm2015, %v3308, 0
      %v3349 = vsel %vm2015, %v3310, 0
      %v3351 = vsel %vm2015, %v3312, 0
      %v3353 = vsel %vm2015, %v3314, 0
      %v3355 = vsel %vm2015, %v3316, 0
      %v3357 = vsel %vm2015, %v3318, 0
      %v3359 = vsel %vm2015, %v3320, 0
      %v3361 = vsel %vm2015, %v3322, 0
      %v3363 = vsel %vm2015, %v3324, 0
      %v3365 = vsel %vm2015, %v3326, 0
      %v3368 = vsel %vm2048, %v3334, 0
      %3370 = vmatprep.subr.bf16.mxu0 0
      %3371 = vmatpush1.bf16.msra.mxu0 %v3368
      %3372 = vmatprep.subr.bf16.mxu0 0
      %3373 = vmatpush1.bf16.msra.mxu0 0
      %3374 = vmatprep.subr.bf16.mxu0 0
      %3375 = vmatpush1.bf16.msra.mxu0 0
      %3376 = vmatprep.subr.bf16.mxu0 0
      %3377 = vmatpush1.bf16.msra.mxu0 0
      %3378 = vmatprep.subr.bf16.mxu0 0
      %3379 = vmatpush1.bf16.msra.mxu0 0
      %3380 = vmatprep.subr.bf16.mxu0 0
      %3381 = vmatpush1.bf16.msra.mxu0 0
      %3382 = vmatprep.subr.bf16.mxu0 0
      %3383 = vmatpush1.bf16.msra.mxu0 0
      %3384 = vmatprep.subr.bf16.mxu0 0
      %3385 = vmatpush1.bf16.msra.mxu0 0
      %3386 = vmatprep.subr.bf16.mxu0 0
      %3387 = vmatpush1.bf16.msra.mxu0 0
      %3388 = vmatprep.subr.bf16.mxu0 0
      %3389 = vmatpush1.bf16.msra.mxu0 0
      %3390 = vmatprep.subr.bf16.mxu0 0
      %3391 = vmatpush1.bf16.msra.mxu0 0
      %3392 = vmatprep.subr.bf16.mxu0 0
      %3393 = vmatpush1.bf16.msra.mxu0 0
      %3394 = vmatprep.subr.bf16.mxu0 0
      %3395 = vmatpush1.bf16.msra.mxu0 0
      %3396 = vmatprep.subr.bf16.mxu0 0
      %3397 = vmatpush1.bf16.msra.mxu0 0
      %3398 = vmatprep.subr.bf16.mxu0 0
      %3399 = vmatpush1.bf16.msra.mxu0 0
      %3400 = vmatprep.subr.bf16.mxu0 0
      %3401 = vmatpush1.bf16.msra.mxu0 0
      %3402 = vmatprep.mubr.bf16.mxu0 0
      %3403 = vmatmul.mubr.bf16.gmra.mrb[0].mxu0 %v3335
      %v3404 = vpop.f32.mrb[0].mxu0
      %v3405 = vadd.f32 0.0, %v3404
      %v3406 = vpop.f32.mrb[0].mxu0
      %v3407 = vpop.f32.mrb[0].mxu0
      %v3408 = vadd.f32 0.0, %v3407
      %v3409 = vpop.f32.mrb[0].mxu0
      %3410 = vmatprep.mubr.bf16.mxu0 0
      %3411 = vmatmul.mubr.bf16.gmra.mrb[0].mxu0 %v3337
      %v3412 = vpop.f32.mrb[0].mxu0
      %v3413 = vadd.f32 0.0, %v3412
      %v3414 = vpop.f32.mrb[0].mxu0
      %v3415 = vpop.f32.mrb[0].mxu0
      %v3416 = vadd.f32 0.0, %v3415
      %v3417 = vpop.f32.mrb[0].mxu0
      %3418 = vmatprep.mubr.bf16.mxu0 0
      %3419 = vmatmul.mubr.bf16.gmra.mrb[0].mxu0 %v3339
      %v3420 = vpop.f32.mrb[0].mxu0
      %v3421 = vadd.f32 0.0, %v3420
      %v3422 = vpop.f32.mrb[0].mxu0
      %v3423 = vpop.f32.mrb[0].mxu0
      %v3424 = vadd.f32 0.0, %v3423
      %v3425 = vpop.f32.mrb[0].mxu0
      %3426 = vmatprep.mubr.bf16.mxu0 0
      %3427 = vmatmul.mubr.bf16.gmra.mrb[0].mxu0 %v3341
      %v3428 = vpop.f32.mrb[0].mxu0
      %v3429 = vadd.f32 0.0, %v3428
      %v3430 = vpop.f32.mrb[0].mxu0
      %v3431 = vpop.f32.mrb[0].mxu0
      %v3432 = vadd.f32 0.0, %v3431
      %v3433 = vpop.f32.mrb[0].mxu0
      %3434 = vmatprep.mubr.bf16.mxu0 0
      %3435 = vmatmul.mubr.bf16.gmra.mrb[0].mxu0 %v3343
      %v3436 = vpop.f32.mrb[0].mxu0
      %v3437 = vadd.f32 0.0, %v3436
      %v3438 = vpop.f32.mrb[0].mxu0
      %v3439 = vpop.f32.mrb[0].mxu0
      %v3440 = vadd.f32 0.0, %v3439
      %v3441 = vpop.f32.mrb[0].mxu0
      %3442 = vmatprep.mubr.bf16.mxu0 0
      %3443 = vmatmul.mubr.bf16.gmra.mrb[0].mxu0 %v3345
      %v3444 = vpop.f32.mrb[0].mxu0
      %v3445 = vadd.f32 0.0, %v3444
      %v3446 = vpop.f32.mrb[0].mxu0
      %v3447 = vpop.f32.mrb[0].mxu0
      %v3448 = vadd.f32 0.0, %v3447
      %v3449 = vpop.f32.mrb[0].mxu0
      %3450 = vmatprep.mubr.bf16.mxu0 0
      %3451 = vmatmul.mubr.bf16.gmra.mrb[0].mxu0 %v3347
      %v3452 = vpop.f32.mrb[0].mxu0
      %v3453 = vadd.f32 0.0, %v3452
      %v3454 = vpop.f32.mrb[0].mxu0
      %v3455 = vpop.f32.mrb[0].mxu0
      %v3456 = vadd.f32 0.0, %v3455
      %v3457 = vpop.f32.mrb[0].mxu0
      %3458 = vmatprep.mubr.bf16.mxu0 0
      %3459 = vmatmul.mubr.bf16.gmra.mrb[0].mxu0 %v3349
      %v3460 = vpop.f32.mrb[0].mxu0
      %v3461 = vadd.f32 0.0, %v3460
      %v3462 = vpop.f32.mrb[0].mxu0
      %v3463 = vpop.f32.mrb[0].mxu0
      %v3464 = vadd.f32 0.0, %v3463
      %v3465 = vpop.f32.mrb[0].mxu0
      %3466 = vmatprep.mubr.bf16.mxu0 0
      %3467 = vmatmul.mubr.bf16.gmra.mrb[0].mxu0 %v3351
      %v3468 = vpop.f32.mrb[0].mxu0
      %v3469 = vadd.f32 0.0, %v3468
      %v3470 = vpop.f32.mrb[0].mxu0
      %v3471 = vpop.f32.mrb[0].mxu0
      %v3472 = vadd.f32 0.0, %v3471
      %v3473 = vpop.f32.mrb[0].mxu0
      %3474 = vmatprep.mubr.bf16.mxu0 0
      %3475 = vmatmul.mubr.bf16.gmra.mrb[0].mxu0 %v3353
      %v3476 = vpop.f32.mrb[0].mxu0
      %v3477 = vadd.f32 0.0, %v3476
      %v3478 = vpop.f32.mrb[0].mxu0
      %v3479 = vpop.f32.mrb[0].mxu0
      %v3480 = vadd.f32 0.0, %v3479
      %v3481 = vpop.f32.mrb[0].mxu0
      %3482 = vmatprep.mubr.bf16.mxu0 0
      %3483 = vmatmul.mubr.bf16.gmra.mrb[0].mxu0 %v3355
      %v3484 = vpop.f32.mrb[0].mxu0
      %v3485 = vadd.f32 0.0, %v3484
      %v3486 = vpop.f32.mrb[0].mxu0
      %v3487 = vpop.f32.mrb[0].mxu0
      %v3488 = vadd.f32 0.0, %v3487
      %v3489 = vpop.f32.mrb[0].mxu0
      %3490 = vmatprep.mubr.bf16.mxu0 0
      %3491 = vmatmul.mubr.bf16.gmra.mrb[0].mxu0 %v3357
      %v3492 = vpop.f32.mrb[0].mxu0
      %v3493 = vadd.f32 0.0, %v3492
      %v3494 = vpop.f32.mrb[0].mxu0
      %v3495 = vpop.f32.mrb[0].mxu0
      %v3496 = vadd.f32 0.0, %v3495
      %v3497 = vpop.f32.mrb[0].mxu0
      %3498 = vmatprep.mubr.bf16.mxu0 0
      %3499 = vmatmul.mubr.bf16.gmra.mrb[0].mxu0 %v3359
      %v3500 = vpop.f32.mrb[0].mxu0
      %v3501 = vadd.f32 0.0, %v3500
      %v3502 = vpop.f32.mrb[0].mxu0
      %v3503 = vpop.f32.mrb[0].mxu0
      %v3504 = vadd.f32 0.0, %v3503
      %v3505 = vpop.f32.mrb[0].mxu0
      %3506 = vmatprep.mubr.bf16.mxu0 0
      %3507 = vmatmul.mubr.bf16.gmra.mrb[0].mxu0 %v3361
      %v3508 = vpop.f32.mrb[0].mxu0
      %v3509 = vadd.f32 0.0, %v3508
      %v3510 = vpop.f32.mrb[0].mxu0
      %v3511 = vpop.f32.mrb[0].mxu0
      %v3512 = vadd.f32 0.0, %v3511
      %v3513 = vpop.f32.mrb[0].mxu0
      %3514 = vmatprep.mubr.bf16.mxu0 0
      %3515 = vmatmul.mubr.bf16.gmra.mrb[0].mxu0 %v3363
      %v3516 = vpop.f32.mrb[0].mxu0
      %v3517 = vadd.f32 0.0, %v3516
      %v3518 = vpop.f32.mrb[0].mxu0
      %v3519 = vpop.f32.mrb[0].mxu0
      %v3520 = vadd.f32 0.0, %v3519
      %v3521 = vpop.f32.mrb[0].mxu0
      %3522 = vmatprep.mubr.bf16.mxu0 0
      %3523 = vmatmul.mubr.bf16.gmra.mrb[0].mxu0 %v3365
      %v3524 = vpop.f32.mrb[0].mxu0
      %v3525 = vadd.f32 0.0, %v3524
      %v3526 = vpop.f32.mrb[0].mxu0
      %v3527 = vpop.f32.mrb[0].mxu0
      %v3528 = vadd.f32 0.0, %v3527
      %v3529 = vpop.f32.mrb[0].mxu0
      %3530 = vdwg.mxu0
      %v3531 = vadd.f32 %v2288, %v3405
      %v3532 = vadd.f32 %v2291, %v3408
      %v3533 = vadd.f32 %v2296, %v3413
      %v3534 = vadd.f32 %v2299, %v3416
      %v3535 = vadd.f32 %v2304, %v3421
      %v3536 = vadd.f32 %v2307, %v3424
      %v3537 = vadd.f32 %v2312, %v3429
      %v3538 = vadd.f32 %v2315, %v3432
      %v3539 = vadd.f32 %v2320, %v3437
      %v3540 = vadd.f32 %v2323, %v3440
      %v3541 = vadd.f32 %v2328, %v3445
      %v3542 = vadd.f32 %v2331, %v3448
      %v3543 = vadd.f32 %v2336, %v3453
      %v3544 = vadd.f32 %v2339, %v3456
      %v3545 = vadd.f32 %v2344, %v3461
      %v3546 = vadd.f32 %v2347, %v3464
      %v3547 = vadd.f32 %v2352, %v3469
      %v3548 = vadd.f32 %v2355, %v3472
      %v3549 = vadd.f32 %v2360, %v3477
      %v3550 = vadd.f32 %v2363, %v3480
      %v3551 = vadd.f32 %v2368, %v3485
      %v3552 = vadd.f32 %v2371, %v3488
      %v3553 = vadd.f32 %v2376, %v3493
      %v3554 = vadd.f32 %v2379, %v3496
      %v3555 = vadd.f32 %v2384, %v3501
      %v3556 = vadd.f32 %v2387, %v3504
      %v3557 = vadd.f32 %v2392, %v3509
      %v3558 = vadd.f32 %v2395, %v3512
      %v3559 = vadd.f32 %v2400, %v3517
      %v3560 = vadd.f32 %v2403, %v3520
      %v3561 = vadd.f32 %v2408, %v3525
      %v3562 = vadd.f32 %v2411, %v3528
      %v3563 = vld [vmem:[%s2] sm:$0x1]
      %v3565 = vlaneseq
      %v3566 = vshrl.u32 %v3565, 7
      %v3567 = vsub.s32 0, %v3566
      %v3568 = vrot.slane %v3563, %v3567
      %v3570 = vadd.f32 %v3531, %v3568
      %v3571 = vadd.f32 %v3532, %v3568
      %v3572 = vadd.f32 %v3533, %v3568
      %v3573 = vadd.f32 %v3534, %v3568
      %v3574 = vadd.f32 %v3535, %v3568
      %v3575 = vadd.f32 %v3536, %v3568
      %v3576 = vadd.f32 %v3537, %v3568
      %v3577 = vadd.f32 %v3538, %v3568
      %v3578 = vadd.f32 %v3539, %v3568
      %v3579 = vadd.f32 %v3540, %v3568
      %v3580 = vadd.f32 %v3541, %v3568
      %v3581 = vadd.f32 %v3542, %v3568
      %v3582 = vadd.f32 %v3543, %v3568
      %v3583 = vadd.f32 %v3544, %v3568
      %v3584 = vadd.f32 %v3545, %v3568
      %v3585 = vadd.f32 %v3546, %v3568
      %v3586 = vadd.f32 %v3547, %v3568
      %v3587 = vadd.f32 %v3548, %v3568
      %v3588 = vadd.f32 %v3549, %v3568
      %v3589 = vadd.f32 %v3550, %v3568
      %v3590 = vadd.f32 %v3551, %v3568
      %v3591 = vadd.f32 %v3552, %v3568
      %v3592 = vadd.f32 %v3553, %v3568
      %v3593 = vadd.f32 %v3554, %v3568
      %v3594 = vadd.f32 %v3555, %v3568
      %v3595 = vadd.f32 %v3556, %v3568
      %v3596 = vadd.f32 %v3557, %v3568
      %v3597 = vadd.f32 %v3558, %v3568
      %v3598 = vadd.f32 %v3559, %v3568
      %v3599 = vadd.f32 %v3560, %v3568
      %v3600 = vadd.f32 %v3561, %v3568
      %v3601 = vadd.f32 %v3562, %v3568
      %v3602 = vmax.f32 %v3570, 0.0
      %v3603 = vmax.f32 %v3571, 0.0
      %v3604 = vmax.f32 %v3572, 0.0
      %v3605 = vmax.f32 %v3573, 0.0
      %v3606 = vmax.f32 %v3574, 0.0
      %v3607 = vmax.f32 %v3575, 0.0
      %v3608 = vmax.f32 %v3576, 0.0
      %v3609 = vmax.f32 %v3577, 0.0
      %v3610 = vmax.f32 %v3578, 0.0
      %v3611 = vmax.f32 %v3579, 0.0
      %v3612 = vmax.f32 %v3580, 0.0
      %v3613 = vmax.f32 %v3581, 0.0
      %v3614 = vmax.f32 %v3582, 0.0
      %v3615 = vmax.f32 %v3583, 0.0
      %v3616 = vmax.f32 %v3584, 0.0
      %v3617 = vmax.f32 %v3585, 0.0
      %v3618 = vmax.f32 %v3586, 0.0
      %v3619 = vmax.f32 %v3587, 0.0
      %v3620 = vmax.f32 %v3588, 0.0
      %v3621 = vmax.f32 %v3589, 0.0
      %v3622 = vmax.f32 %v3590, 0.0
      %v3623 = vmax.f32 %v3591, 0.0
      %v3624 = vmax.f32 %v3592, 0.0
      %v3625 = vmax.f32 %v3593, 0.0
      %v3626 = vmax.f32 %v3594, 0.0
      %v3627 = vmax.f32 %v3595, 0.0
      %v3628 = vmax.f32 %v3596, 0.0
      %v3629 = vmax.f32 %v3597, 0.0
      %v3630 = vmax.f32 %v3598, 0.0
      %v3631 = vmax.f32 %v3599, 0.0
      %v3632 = vmax.f32 %v3600, 0.0
      %v3633 = vmax.f32 %v3601, 0.0
      %3634 = vst.msk [vmem:[%s170] sm:$0xff] %vm1059, %v3602
      %3635 = vst.msk [vmem:[%s170 + $0x8] sm:$0xff] %vm1059, %v3603
      %3636 = vst.msk [vmem:[%s170 + $0x10] sm:$0xff] %vm1059, %v3604
      %3637 = vst.msk [vmem:[%s170 + $0x18] sm:$0xff] %vm1059, %v3605
      %3638 = vst.msk [vmem:[%s170 + $0x20] sm:$0xff] %vm1059, %v3606
      %3639 = vst.msk [vmem:[%s170 + $0x28] sm:$0xff] %vm1059, %v3607
      %3640 = vst.msk [vmem:[%s170 + $0x30] sm:$0xff] %vm1059, %v3608
      %3641 = vst.msk [vmem:[%s170 + $0x38] sm:$0xff] %vm1059, %v3609
      %3642 = vst.msk [vmem:[%s170 + $0x40] sm:$0xff] %vm1059, %v3610
      %3643 = vst.msk [vmem:[%s170 + $0x48] sm:$0xff] %vm1059, %v3611
      %3644 = vst.msk [vmem:[%s170 + $0x50] sm:$0xff] %vm1059, %v3612
      %3645 = vst.msk [vmem:[%s170 + $0x58] sm:$0xff] %vm1059, %v3613
      %3646 = vst.msk [vmem:[%s170 + $0x60] sm:$0xff] %vm1059, %v3614
      %3647 = vst.msk [vmem:[%s170 + $0x68] sm:$0xff] %vm1059, %v3615
      %3648 = vst.msk [vmem:[%s170 + $0x70] sm:$0xff] %vm1059, %v3616
      %3649 = vst.msk [vmem:[%s170 + $0x78] sm:$0xff] %vm1059, %v3617
      %3650 = vst.msk [vmem:[%s170 + $0x80] sm:$0xff] %vm1059, %v3618
      %3651 = vst.msk [vmem:[%s170 + $0x88] sm:$0xff] %vm1059, %v3619
      %3652 = vst.msk [vmem:[%s170 + $0x90] sm:$0xff] %vm1059, %v3620
      %3653 = vst.msk [vmem:[%s170 + $0x98] sm:$0xff] %vm1059, %v3621
      %3654 = vst.msk [vmem:[%s170 + $0xa0] sm:$0xff] %vm1059, %v3622
      %3655 = vst.msk [vmem:[%s170 + $0xa8] sm:$0xff] %vm1059, %v3623
      %3656 = vst.msk [vmem:[%s170 + $0xb0] sm:$0xff] %vm1059, %v3624
      %3657 = vst.msk [vmem:[%s170 + $0xb8] sm:$0xff] %vm1059, %v3625
      %3658 = vst.msk [vmem:[%s170 + $0xc0] sm:$0xff] %vm1059, %v3626
      %3659 = vst.msk [vmem:[%s170 + $0xc8] sm:$0xff] %vm1059, %v3627
      %3660 = vst.msk [vmem:[%s170 + $0xd0] sm:$0xff] %vm1059, %v3628
      %3661 = vst.msk [vmem:[%s170 + $0xd8] sm:$0xff] %vm1059, %v3629
      %3662 = vst.msk [vmem:[%s170 + $0xe0] sm:$0xff] %vm1059, %v3630
      %3663 = vst.msk [vmem:[%s170 + $0xe8] sm:$0xff] %vm1059, %v3631
      %3664 = vst.msk [vmem:[%s170 + $0xf0] sm:$0xff] %vm1059, %v3632
      %3665 = vst.msk [vmem:[%s170 + $0xf8] sm:$0xff] %vm1059, %v3633
      %p3666 = scmp.lt.s32.totalorder %s14, 1
      %s3667 = scalar_select %p3666, %s14, 1
      %s3668 = smul.addr %s3667, 32
      %s3669 = smul.addr %s3668, 8
      %s3670 = scalar_lea.vmem %s3, %s3669
      // Predicated region
      $region33: #{tpu_custom_call.1} parent=31 // pred_check
        %p3671 = pneg %p100
      $region34: #{tpu_custom_call.1} parent=31 // pred_check_branch
        %3673 = sbr.rel (%p3671) target = $region36
      $region35: #{tpu_custom_call.1} parent=31 // pred_region
        _
      $region36: #{tpu_custom_call.1} parent=31 // pred_fallthru
        _
    $region32: #{tpu_custom_call.1} parent=5 // pred_fallthru
      _
    %p3674 = scmp.le.s32.totalorder 2, %s9
    // Predicated region
    $region37: #{tpu_custom_call.1} parent=5 // pred_check
      %p3675 = pneg %p3674
    $region38: #{tpu_custom_call.1} parent=5 // pred_check_branch
      %3677 = sbr.rel (%p3675) target = $region40
    $region39: #{tpu_custom_call.1} parent=5 // pred_region
      %s3678 = ssub.s32 %s9, 2
      // Predicated region
      $region41: #{tpu_custom_call.1} parent=39 // pred_check
        %p3679 = pneg %p106
      $region42: #{tpu_custom_call.1} parent=39 // pred_check_branch
        %3681 = sbr.rel (%p3679) target = $region44
      $region43: #{tpu_custom_call.1} parent=39 // pred_region
        %p3682 = scmp.lt.s32.totalorder %s15, 1
        %s3683 = scalar_select %p3682, %s15, 1
        %s3684 = smul.addr %s3683, 32
        %s3685 = smul.addr %s3684, 8
        %s3686 = scalar_lea.vmem %s3, %s3685
      $region44: #{tpu_custom_call.1} parent=39 // pred_fallthru
        _
    $region40: #{tpu_custom_call.1} parent=5 // pred_fallthru
      _
  $region6: #{tpu_custom_call.1} parent=0 // loop_footer
    %s13 = sadd.s32 1, %s9
  $region7: #{tpu_custom_call.1} parent=0 // loop_footer_branch
    %8 = sbr.rel target = $region3
  $region8: #{tpu_custom_call.1} parent=0 // loop_exit
    _

</llo_original>
